<compile_context>
chip_gen: v7x
topology: tpu7x:2x2x1
jax: 0.10.0
libtpu: 0.0.40
codegen_flags: <defaults>
</compile_context>

<pallas_src>
import functools

import jax
import jax.numpy as jnp
from jax.experimental import pallas as pl
from jax.experimental.pallas import tpu as pltpu

_VMEM = pl.BlockSpec(memory_space=pltpu.MemorySpace.VMEM)


# ----------------------------------------------------------------------------
# single fused kernel: TreeLSTM propagation + readout + deep top MLP
# ----------------------------------------------------------------------------
def _fused_kernel(num_levels, h_size,
                  x_ref, emo_ref, h0_ref, c0_ref, adj_ref, haschild_ref,
                  frontiers_ref, head_sel_ref, inner_avg_ref,
                  w_iou_ref, u_iou_ref, b_iou_ref, u_f_ref, b_f_ref,
                  w_in_h_ref, w_in_i_ref, w_in_e_ref, b_in_ref,
                  l0_w_ref, l0_b_ref, l_out_w_ref, l_out_b_ref,
                  out_ref):
    H = h_size
    f32 = jnp.float32

    adj = adj_ref[...]                       # (N, N)  adj[parent, child] = 1
    hc = haschild_ref[...] > 0.0             # (N, 1)

    # W_iou(X)  (bias-free) computed once, kept as the full (N, 3H) tile.
    iou_x = jnp.dot(x_ref[...], w_iou_ref[...], preferred_element_type=f32)

    u_iou = u_iou_ref[...]                   # (H, 3H)   packed [U_i | U_o | U_u]
    b_iou = b_iou_ref[...]                   # (1, 3H)
    u_f = u_f_ref[...]                       # (H, H)
    b_f = b_f_ref[...]                       # (1, H)

    h = h0_ref[...]                          # (N, H)
    c = c0_ref[...]                          # (N, H)

    # dgl.prop_nodes_topo level-by-level; statically unrolled, h/c never leave VMEM.
    for level in range(num_levels):
        fr = frontiers_ref[level] > 0.0      # (N, 1)

        # per-child forget gate on every node's own h (children already final)
        f = jax.nn.sigmoid(jnp.dot(h, u_f, preferred_element_type=f32) + b_f)

        # fused child-sum reduce:  adj @ [h | f*c]  ->  [h_sum | fc_sum]
        red = jnp.dot(adj, jnp.concatenate([h, f * c], axis=-1),
                      preferred_element_type=f32)               # (N, 2H)
        h_sum = red[:, :H]
        fc_sum = red[:, H:]

        # reduce_func overwrites iou/c for nodes with children; leaves keep W_iou(X), c0
        iou = jnp.where(hc,
                        jnp.dot(h_sum, u_iou, preferred_element_type=f32),
                        iou_x) + b_iou                          # (N, 3H)
        i_g = jax.nn.sigmoid(iou[:, :H])
        o_g = jax.nn.sigmoid(iou[:, H:2 * H])
        u_g = jnp.tanh(iou[:, 2 * H:])
        c_pre = jnp.where(hc, fc_sum, c)

        c_new = i_g * u_g + c_pre
        h_new = o_g * jnp.tanh(c_new)

        # only frontier nodes update this level
        h = jnp.where(fr, h_new, h)
        c = jnp.where(fr, c_new, c)

    # readout: root hidden state + mean of inner nodes, as (T, N) matmuls
    head_h = jnp.dot(head_sel_ref[...], h, preferred_element_type=f32)    # (T, H)
    inner_h = jnp.dot(inner_avg_ref[...], h, preferred_element_type=f32)  # (T, H)

    # top net (deep=True, logit=True); Dropout == identity in eval.
    # l_in is applied split over [head_h | inner_h | emo] (== concat then matmul).
    y = (jnp.dot(head_h, w_in_h_ref[...], preferred_element_type=f32)
         + jnp.dot(inner_h, w_in_i_ref[...], preferred_element_type=f32)
         + jnp.dot(emo_ref[...], w_in_e_ref[...], preferred_element_type=f32)
         + b_in_ref[...])
    y = jnp.maximum(y, 0.0)                                               # ReLU
    y = jnp.maximum(
        jnp.dot(y, l0_w_ref[...], preferred_element_type=f32) + l0_b_ref[...], 0.0)
    out_ref[...] = jax.nn.sigmoid(
        jnp.dot(y, l_out_w_ref[...], preferred_element_type=f32) + l_out_b_ref[...])


def deep_tree_lstm_forward(params, X, emo, h0, c0, adj, frontiers, haschild,
                           head_sel, inner_avg):
    H = h0.shape[1]
    T = head_sel.shape[0]
    num_classes = params["l_out_w"].shape[1]
    num_levels = frontiers.shape[0]

    # split l_in weight over the three concatenated inputs (done once, outside kernel)
    l_in_w = params["l_in_w"]
    w_in_h = l_in_w[:H]
    w_in_i = l_in_w[H:2 * H]
    w_in_e = l_in_w[2 * H:]

    kernel = functools.partial(_fused_kernel, num_levels, H)
    return pl.pallas_call(
        kernel,
        out_shape=jax.ShapeDtypeStruct((T, num_classes), jnp.float32),
        in_specs=[_VMEM] * 22,
        out_specs=_VMEM,
    )(X, emo, h0, c0, adj, haschild, frontiers, head_sel, inner_avg,
      params["W_iou"], params["U_iou"], params["b_iou"],
      params["U_f"], params["b_f"],
      w_in_h, w_in_i, w_in_e, params["l_in_b"],
      params["l0_w"], params["l0_b"], params["l_out_w"], params["l_out_b"])


# ----------------------------------------------------------------------------
# deterministic parameter construction (shapes follow the PyTorch module;
# nn.Linear weights stored pre-transposed as (in_features, out_features))
# ----------------------------------------------------------------------------
def init_params(key, x_size, h_size, emo_size, top_sizes, num_classes):
    ks = jax.random.split(key, 10)

    def w(k, shp):
        return jax.random.normal(k, shp, jnp.float32) * 0.1

    p = {}
    # ChildSumTreeLSTMCell
    p["W_iou"] = w(ks[0], (x_size, 3 * h_size))       # Linear(x, 3h, bias=False)^T
    p["U_iou"] = w(ks[1], (h_size, 3 * h_size))       # Linear(h, 3h, bias=False)^T
    p["b_iou"] = jnp.zeros((1, 3 * h_size), jnp.float32)
    p["U_f"] = w(ks[2], (h_size, h_size))             # Linear(h, h) with bias
    p["b_f"] = w(ks[3], (1, h_size))
    # top net: Linear(2h+emo, t0) ReLU, Linear(t0, t1) ReLU, Linear(t1, C) Sigmoid
    d_in = 2 * h_size + emo_size
    p["l_in_w"] = w(ks[4], (d_in, top_sizes[0]));       p["l_in_b"] = w(ks[5], (1, top_sizes[0]))
    p["l0_w"] = w(ks[6], (top_sizes[0], top_sizes[1])); p["l0_b"] = w(ks[7], (1, top_sizes[1]))
    p["l_out_w"] = w(ks[8], (top_sizes[1], num_classes)); p["l_out_b"] = w(ks[9], (1, num_classes))
    return p


if __name__ == "__main__":
    x_size, h_size, num_classes, emo_size = 16, 32, 4, 8
    top_sizes = (32, 16)

    # Synthetic SST-style batch: 2 binary trees of 7 nodes each
    # (per-tree layout: [root, child1, child2, leaf, leaf, leaf, leaf]),
    # padded with 2 isolated dummy nodes to N = 16.
    N, T = 16, 2
    root_ids = [0, 7]
    lims = [0, 7, 14]            # graph.number_of_nodes() == 14
    edges = []                   # (parent, child): messages flow child -> parent
    for off in (0, 7):
        edges += [(off, off + 1), (off, off + 2),
                  (off + 1, off + 3), (off + 1, off + 4),
                  (off + 2, off + 5), (off + 2, off + 6)]
    adj = jnp.zeros((N, N), jnp.float32)
    for pnt, chd in edges:
        adj = adj.at[pnt, chd].set(1.0)
    haschild = (jnp.sum(adj, axis=1, keepdims=True) > 0).astype(jnp.float32)   # (N, 1)

    def frontier_mask(ids):
        return jnp.zeros((N, 1), jnp.float32).at[jnp.array(ids), 0].set(1.0)

    frontiers = jnp.stack(
        [frontier_mask([3, 4, 5, 6, 10, 11, 12, 13]),   # leaves
         frontier_mask([1, 2, 8, 9]),                   # internal nodes
         frontier_mask([0, 7])], axis=0)                # roots          -> (L, N, 1)

    # readout matrices: root selection and per-tree inner-node averaging (h[s+1:e-1])
    head_sel = jnp.zeros((T, N), jnp.float32).at[
        jnp.arange(T), jnp.array(root_ids)].set(1.0)
    inner_avg = jnp.zeros((T, N), jnp.float32)
    for t, (s, e) in enumerate(zip(lims[:-1], lims[1:])):
        cnt = (e - 1) - (s + 1)
        inner_avg = inner_avg.at[t, s + 1:e - 1].set(1.0 / cnt)

    key = jax.random.PRNGKey(0)
    kx, ke, kp = jax.random.split(key, 3)
    X = jax.random.normal(kx, (N, x_size), jnp.float32)          # batch.X
    emo = jax.random.normal(ke, (T, emo_size), jnp.float32)      # batch.emo (per tree)
    h0 = jnp.zeros((N, h_size), jnp.float32)                     # initial h
    c0 = jnp.zeros((N, h_size), jnp.float32)                     # initial c
    params = init_params(kp, x_size, h_size, emo_size, top_sizes, num_classes)

    out = deep_tree_lstm_forward(params, X, emo, h0, c0, adj, frontiers, haschild,
                                 head_sel, inner_avg)
    jax.block_until_ready(out)
    assert out.shape == (T, num_classes), out.shape
    print("KERNEL_OK")
</pallas_src>

<mosaic_0001>
module attributes {stable_mosaic.version = 11 : i64} {
  func.func @_fused_kernel(%arg0: memref<16x16xf32, #tpu.memory_space<vmem>>, %arg1: memref<2x8xf32, #tpu.memory_space<vmem>>, %arg2: memref<16x32xf32, #tpu.memory_space<vmem>>, %arg3: memref<16x32xf32, #tpu.memory_space<vmem>>, %arg4: memref<16x16xf32, #tpu.memory_space<vmem>>, %arg5: memref<16x1xf32, #tpu.memory_space<vmem>>, %arg6: memref<3x16x1xf32, #tpu.memory_space<vmem>>, %arg7: memref<2x16xf32, #tpu.memory_space<vmem>>, %arg8: memref<2x16xf32, #tpu.memory_space<vmem>>, %arg9: memref<16x96xf32, #tpu.memory_space<vmem>>, %arg10: memref<32x96xf32, #tpu.memory_space<vmem>>, %arg11: memref<1x96xf32, #tpu.memory_space<vmem>>, %arg12: memref<32x32xf32, #tpu.memory_space<vmem>>, %arg13: memref<1x32xf32, #tpu.memory_space<vmem>>, %arg14: memref<32x32xf32, #tpu.memory_space<vmem>>, %arg15: memref<32x32xf32, #tpu.memory_space<vmem>>, %arg16: memref<8x32xf32, #tpu.memory_space<vmem>>, %arg17: memref<1x32xf32, #tpu.memory_space<vmem>>, %arg18: memref<32x16xf32, #tpu.memory_space<vmem>>, %arg19: memref<1x16xf32, #tpu.memory_space<vmem>>, %arg20: memref<16x4xf32, #tpu.memory_space<vmem>>, %arg21: memref<1x4xf32, #tpu.memory_space<vmem>>, %arg22: memref<2x4xf32, #tpu.memory_space<vmem>>) attributes {dimension_semantics = [], scalar_prefetch = 0 : i64, scratch_operands = 0 : i64, tpu.core_type = #tpu.core_type<tc>} {
    %c0 = arith.constant 0 : index
    %c0_0 = arith.constant 0 : index
    %0 = vector.load %arg4[%c0, %c0_0] : memref<16x16xf32, #tpu.memory_space<vmem>>, vector<16x16xf32>
    %c0_1 = arith.constant 0 : index
    %c0_2 = arith.constant 0 : index
    %1 = vector.load %arg5[%c0_1, %c0_2] : memref<16x1xf32, #tpu.memory_space<vmem>>, vector<16x1xf32>
    %cst = arith.constant 0.000000e+00 : f32
    %2 = vector.broadcast %cst : f32 to vector<16x1xf32>
    %3 = arith.cmpf ogt, %1, %2 : vector<16x1xf32>
    %c0_3 = arith.constant 0 : index
    %c0_4 = arith.constant 0 : index
    %4 = vector.load %arg0[%c0_3, %c0_4] : memref<16x16xf32, #tpu.memory_space<vmem>>, vector<16x16xf32>
    %c0_5 = arith.constant 0 : index
    %c0_6 = arith.constant 0 : index
    %5 = vector.load %arg9[%c0_5, %c0_6] : memref<16x96xf32, #tpu.memory_space<vmem>>, vector<16x96xf32>
    %cst_7 = arith.constant dense<0.000000e+00> : vector<16x96xf32>
    %6 = tpu.matmul %4, %5, %cst_7 {dimension_numbers = #tpu.dot_dimension_numbers<[1], [0], [0], [1], [0, 0, 1, 1], [], []>} : vector<16x16xf32>, vector<16x96xf32>, vector<16x96xf32> -> vector<16x96xf32>
    %c0_8 = arith.constant 0 : index
    %c0_9 = arith.constant 0 : index
    %7 = vector.load %arg10[%c0_8, %c0_9] : memref<32x96xf32, #tpu.memory_space<vmem>>, vector<32x96xf32>
    %c0_10 = arith.constant 0 : index
    %c0_11 = arith.constant 0 : index
    %8 = vector.load %arg11[%c0_10, %c0_11] : memref<1x96xf32, #tpu.memory_space<vmem>>, vector<1x96xf32>
    %c0_12 = arith.constant 0 : index
    %c0_13 = arith.constant 0 : index
    %9 = vector.load %arg12[%c0_12, %c0_13] : memref<32x32xf32, #tpu.memory_space<vmem>>, vector<32x32xf32>
    %c0_14 = arith.constant 0 : index
    %c0_15 = arith.constant 0 : index
    %10 = vector.load %arg13[%c0_14, %c0_15] : memref<1x32xf32, #tpu.memory_space<vmem>>, vector<1x32xf32>
    %c0_16 = arith.constant 0 : index
    %c0_17 = arith.constant 0 : index
    %11 = vector.load %arg2[%c0_16, %c0_17] : memref<16x32xf32, #tpu.memory_space<vmem>>, vector<16x32xf32>
    %c0_18 = arith.constant 0 : index
    %c0_19 = arith.constant 0 : index
    %12 = vector.load %arg3[%c0_18, %c0_19] : memref<16x32xf32, #tpu.memory_space<vmem>>, vector<16x32xf32>
    %c0_20 = arith.constant 0 : index
    %c0_21 = arith.constant 0 : index
    %c0_22 = arith.constant 0 : index
    %13 = vector.load %arg6[%c0_20, %c0_21, %c0_22] : memref<3x16x1xf32, #tpu.memory_space<vmem>>, vector<1x16x1xf32>
    %14 = vector.shape_cast %13 : vector<1x16x1xf32> to vector<16x1xf32>
    %cst_23 = arith.constant 0.000000e+00 : f32
    %15 = vector.broadcast %cst_23 : f32 to vector<16x1xf32>
    %16 = arith.cmpf ogt, %14, %15 : vector<16x1xf32>
    %cst_24 = arith.constant dense<0.000000e+00> : vector<16x32xf32>
    %17 = tpu.matmul %11, %9, %cst_24 {dimension_numbers = #tpu.dot_dimension_numbers<[1], [0], [0], [1], [0, 0, 1, 1], [], []>} : vector<16x32xf32>, vector<32x32xf32>, vector<16x32xf32> -> vector<16x32xf32>
    %18 = vector.broadcast %10 : vector<1x32xf32> to vector<16x32xf32>
    %19 = arith.addf %17, %18 : vector<16x32xf32>
    %20 = arith.negf %19 : vector<16x32xf32>
    %21 = math.exp %20 : vector<16x32xf32>
    %cst_25 = arith.constant 1.000000e+00 : f32
    %22 = vector.broadcast %cst_25 : f32 to vector<16x32xf32>
    %23 = arith.addf %22, %21 : vector<16x32xf32>
    %24 = arith.divf %22, %23 : vector<16x32xf32>
    %25 = arith.mulf %24, %12 : vector<16x32xf32>
    %26 = tpu.concatenate %11, %25 in 1 : vector<16x32xf32>, vector<16x32xf32> -> vector<16x64xf32>
    %cst_26 = arith.constant dense<0.000000e+00> : vector<16x64xf32>
    %27 = tpu.matmul %0, %26, %cst_26 {dimension_numbers = #tpu.dot_dimension_numbers<[1], [0], [0], [1], [0, 0, 1, 1], [], []>} : vector<16x16xf32>, vector<16x64xf32>, vector<16x64xf32> -> vector<16x64xf32>
    %28 = vector.extract_strided_slice %27 {offsets = [0, 0], sizes = [16, 32], strides = [1, 1]} : vector<16x64xf32> to vector<16x32xf32>
    %29 = vector.extract_strided_slice %27 {offsets = [0, 32], sizes = [16, 32], strides = [1, 1]} : vector<16x64xf32> to vector<16x32xf32>
    %cst_27 = arith.constant dense<0.000000e+00> : vector<16x96xf32>
    %30 = tpu.matmul %28, %7, %cst_27 {dimension_numbers = #tpu.dot_dimension_numbers<[1], [0], [0], [1], [0, 0, 1, 1], [], []>} : vector<16x32xf32>, vector<32x96xf32>, vector<16x96xf32> -> vector<16x96xf32>
    %31 = vector.shape_cast %3 : vector<16x1xi1> to vector<16x1xi1>
    %32 = vector.broadcast %31 : vector<16x1xi1> to vector<16x96xi1>
    %33 = arith.select %32, %30, %6 : vector<16x96xi1>, vector<16x96xf32>
    %34 = vector.broadcast %8 : vector<1x96xf32> to vector<16x96xf32>
    %35 = arith.addf %33, %34 : vector<16x96xf32>
    %36 = vector.extract_strided_slice %35 {offsets = [0, 0], sizes = [16, 32], strides = [1, 1]} : vector<16x96xf32> to vector<16x32xf32>
    %37 = arith.negf %36 : vector<16x32xf32>
    %38 = math.exp %37 : vector<16x32xf32>
    %cst_28 = arith.constant 1.000000e+00 : f32
    %39 = vector.broadcast %cst_28 : f32 to vector<16x32xf32>
    %40 = arith.addf %39, %38 : vector<16x32xf32>
    %41 = arith.divf %39, %40 : vector<16x32xf32>
    %42 = vector.extract_strided_slice %35 {offsets = [0, 32], sizes = [16, 32], strides = [1, 1]} : vector<16x96xf32> to vector<16x32xf32>
    %43 = arith.negf %42 : vector<16x32xf32>
    %44 = math.exp %43 : vector<16x32xf32>
    %cst_29 = arith.constant 1.000000e+00 : f32
    %45 = vector.broadcast %cst_29 : f32 to vector<16x32xf32>
    %46 = arith.addf %45, %44 : vector<16x32xf32>
    %47 = arith.divf %45, %46 : vector<16x32xf32>
    %48 = vector.extract_strided_slice %35 {offsets = [0, 64], sizes = [16, 32], strides = [1, 1]} : vector<16x96xf32> to vector<16x32xf32>
    %49 = math.tanh %48 : vector<16x32xf32>
    %50 = vector.shape_cast %3 : vector<16x1xi1> to vector<16x1xi1>
    %51 = vector.broadcast %50 : vector<16x1xi1> to vector<16x32xi1>
    %52 = arith.select %51, %29, %12 : vector<16x32xi1>, vector<16x32xf32>
    %53 = arith.mulf %41, %49 : vector<16x32xf32>
    %54 = arith.addf %53, %52 : vector<16x32xf32>
    %55 = math.tanh %54 : vector<16x32xf32>
    %56 = arith.mulf %47, %55 : vector<16x32xf32>
    %57 = vector.shape_cast %16 : vector<16x1xi1> to vector<16x1xi1>
    %58 = vector.broadcast %57 : vector<16x1xi1> to vector<16x32xi1>
    %59 = arith.select %58, %56, %11 : vector<16x32xi1>, vector<16x32xf32>
    %60 = vector.shape_cast %16 : vector<16x1xi1> to vector<16x1xi1>
    %61 = vector.broadcast %60 : vector<16x1xi1> to vector<16x32xi1>
    %62 = arith.select %61, %54, %12 : vector<16x32xi1>, vector<16x32xf32>
    %c1 = arith.constant 1 : index
    %c0_30 = arith.constant 0 : index
    %c0_31 = arith.constant 0 : index
    %63 = vector.load %arg6[%c1, %c0_30, %c0_31] : memref<3x16x1xf32, #tpu.memory_space<vmem>>, vector<1x16x1xf32>
    %64 = vector.shape_cast %63 : vector<1x16x1xf32> to vector<16x1xf32>
    %cst_32 = arith.constant 0.000000e+00 : f32
    %65 = vector.broadcast %cst_32 : f32 to vector<16x1xf32>
    %66 = arith.cmpf ogt, %64, %65 : vector<16x1xf32>
    %cst_33 = arith.constant dense<0.000000e+00> : vector<16x32xf32>
    %67 = tpu.matmul %59, %9, %cst_33 {dimension_numbers = #tpu.dot_dimension_numbers<[1], [0], [0], [1], [0, 0, 1, 1], [], []>} : vector<16x32xf32>, vector<32x32xf32>, vector<16x32xf32> -> vector<16x32xf32>
    %68 = vector.broadcast %10 : vector<1x32xf32> to vector<16x32xf32>
    %69 = arith.addf %67, %68 : vector<16x32xf32>
    %70 = arith.negf %69 : vector<16x32xf32>
    %71 = math.exp %70 : vector<16x32xf32>
    %cst_34 = arith.constant 1.000000e+00 : f32
    %72 = vector.broadcast %cst_34 : f32 to vector<16x32xf32>
    %73 = arith.addf %72, %71 : vector<16x32xf32>
    %74 = arith.divf %72, %73 : vector<16x32xf32>
    %75 = arith.mulf %74, %62 : vector<16x32xf32>
    %76 = tpu.concatenate %59, %75 in 1 : vector<16x32xf32>, vector<16x32xf32> -> vector<16x64xf32>
    %cst_35 = arith.constant dense<0.000000e+00> : vector<16x64xf32>
    %77 = tpu.matmul %0, %76, %cst_35 {dimension_numbers = #tpu.dot_dimension_numbers<[1], [0], [0], [1], [0, 0, 1, 1], [], []>} : vector<16x16xf32>, vector<16x64xf32>, vector<16x64xf32> -> vector<16x64xf32>
    %78 = vector.extract_strided_slice %77 {offsets = [0, 0], sizes = [16, 32], strides = [1, 1]} : vector<16x64xf32> to vector<16x32xf32>
    %79 = vector.extract_strided_slice %77 {offsets = [0, 32], sizes = [16, 32], strides = [1, 1]} : vector<16x64xf32> to vector<16x32xf32>
    %cst_36 = arith.constant dense<0.000000e+00> : vector<16x96xf32>
    %80 = tpu.matmul %78, %7, %cst_36 {dimension_numbers = #tpu.dot_dimension_numbers<[1], [0], [0], [1], [0, 0, 1, 1], [], []>} : vector<16x32xf32>, vector<32x96xf32>, vector<16x96xf32> -> vector<16x96xf32>
    %81 = vector.shape_cast %3 : vector<16x1xi1> to vector<16x1xi1>
    %82 = vector.broadcast %81 : vector<16x1xi1> to vector<16x96xi1>
    %83 = arith.select %82, %80, %6 : vector<16x96xi1>, vector<16x96xf32>
    %84 = vector.broadcast %8 : vector<1x96xf32> to vector<16x96xf32>
    %85 = arith.addf %83, %84 : vector<16x96xf32>
    %86 = vector.extract_strided_slice %85 {offsets = [0, 0], sizes = [16, 32], strides = [1, 1]} : vector<16x96xf32> to vector<16x32xf32>
    %87 = arith.negf %86 : vector<16x32xf32>
    %88 = math.exp %87 : vector<16x32xf32>
    %cst_37 = arith.constant 1.000000e+00 : f32
    %89 = vector.broadcast %cst_37 : f32 to vector<16x32xf32>
    %90 = arith.addf %89, %88 : vector<16x32xf32>
    %91 = arith.divf %89, %90 : vector<16x32xf32>
    %92 = vector.extract_strided_slice %85 {offsets = [0, 32], sizes = [16, 32], strides = [1, 1]} : vector<16x96xf32> to vector<16x32xf32>
    %93 = arith.negf %92 : vector<16x32xf32>
    %94 = math.exp %93 : vector<16x32xf32>
    %cst_38 = arith.constant 1.000000e+00 : f32
    %95 = vector.broadcast %cst_38 : f32 to vector<16x32xf32>
    %96 = arith.addf %95, %94 : vector<16x32xf32>
    %97 = arith.divf %95, %96 : vector<16x32xf32>
    %98 = vector.extract_strided_slice %85 {offsets = [0, 64], sizes = [16, 32], strides = [1, 1]} : vector<16x96xf32> to vector<16x32xf32>
    %99 = math.tanh %98 : vector<16x32xf32>
    %100 = vector.shape_cast %3 : vector<16x1xi1> to vector<16x1xi1>
    %101 = vector.broadcast %100 : vector<16x1xi1> to vector<16x32xi1>
    %102 = arith.select %101, %79, %62 : vector<16x32xi1>, vector<16x32xf32>
    %103 = arith.mulf %91, %99 : vector<16x32xf32>
    %104 = arith.addf %103, %102 : vector<16x32xf32>
    %105 = math.tanh %104 : vector<16x32xf32>
    %106 = arith.mulf %97, %105 : vector<16x32xf32>
    %107 = vector.shape_cast %66 : vector<16x1xi1> to vector<16x1xi1>
    %108 = vector.broadcast %107 : vector<16x1xi1> to vector<16x32xi1>
    %109 = arith.select %108, %106, %59 : vector<16x32xi1>, vector<16x32xf32>
    %110 = vector.shape_cast %66 : vector<16x1xi1> to vector<16x1xi1>
    %111 = vector.broadcast %110 : vector<16x1xi1> to vector<16x32xi1>
    %112 = arith.select %111, %104, %62 : vector<16x32xi1>, vector<16x32xf32>
    %c2 = arith.constant 2 : index
    %c0_39 = arith.constant 0 : index
    %c0_40 = arith.constant 0 : index
    %113 = vector.load %arg6[%c2, %c0_39, %c0_40] : memref<3x16x1xf32, #tpu.memory_space<vmem>>, vector<1x16x1xf32>
    %114 = vector.shape_cast %113 : vector<1x16x1xf32> to vector<16x1xf32>
    %cst_41 = arith.constant 0.000000e+00 : f32
    %115 = vector.broadcast %cst_41 : f32 to vector<16x1xf32>
    %116 = arith.cmpf ogt, %114, %115 : vector<16x1xf32>
    %cst_42 = arith.constant dense<0.000000e+00> : vector<16x32xf32>
    %117 = tpu.matmul %109, %9, %cst_42 {dimension_numbers = #tpu.dot_dimension_numbers<[1], [0], [0], [1], [0, 0, 1, 1], [], []>} : vector<16x32xf32>, vector<32x32xf32>, vector<16x32xf32> -> vector<16x32xf32>
    %118 = vector.broadcast %10 : vector<1x32xf32> to vector<16x32xf32>
    %119 = arith.addf %117, %118 : vector<16x32xf32>
    %120 = arith.negf %119 : vector<16x32xf32>
    %121 = math.exp %120 : vector<16x32xf32>
    %cst_43 = arith.constant 1.000000e+00 : f32
    %122 = vector.broadcast %cst_43 : f32 to vector<16x32xf32>
    %123 = arith.addf %122, %121 : vector<16x32xf32>
    %124 = arith.divf %122, %123 : vector<16x32xf32>
    %125 = arith.mulf %124, %112 : vector<16x32xf32>
    %126 = tpu.concatenate %109, %125 in 1 : vector<16x32xf32>, vector<16x32xf32> -> vector<16x64xf32>
    %cst_44 = arith.constant dense<0.000000e+00> : vector<16x64xf32>
    %127 = tpu.matmul %0, %126, %cst_44 {dimension_numbers = #tpu.dot_dimension_numbers<[1], [0], [0], [1], [0, 0, 1, 1], [], []>} : vector<16x16xf32>, vector<16x64xf32>, vector<16x64xf32> -> vector<16x64xf32>
    %128 = vector.extract_strided_slice %127 {offsets = [0, 0], sizes = [16, 32], strides = [1, 1]} : vector<16x64xf32> to vector<16x32xf32>
    %129 = vector.extract_strided_slice %127 {offsets = [0, 32], sizes = [16, 32], strides = [1, 1]} : vector<16x64xf32> to vector<16x32xf32>
    %cst_45 = arith.constant dense<0.000000e+00> : vector<16x96xf32>
    %130 = tpu.matmul %128, %7, %cst_45 {dimension_numbers = #tpu.dot_dimension_numbers<[1], [0], [0], [1], [0, 0, 1, 1], [], []>} : vector<16x32xf32>, vector<32x96xf32>, vector<16x96xf32> -> vector<16x96xf32>
    %131 = vector.shape_cast %3 : vector<16x1xi1> to vector<16x1xi1>
    %132 = vector.broadcast %131 : vector<16x1xi1> to vector<16x96xi1>
    %133 = arith.select %132, %130, %6 : vector<16x96xi1>, vector<16x96xf32>
    %134 = vector.broadcast %8 : vector<1x96xf32> to vector<16x96xf32>
    %135 = arith.addf %133, %134 : vector<16x96xf32>
    %136 = vector.extract_strided_slice %135 {offsets = [0, 0], sizes = [16, 32], strides = [1, 1]} : vector<16x96xf32> to vector<16x32xf32>
    %137 = arith.negf %136 : vector<16x32xf32>
    %138 = math.exp %137 : vector<16x32xf32>
    %cst_46 = arith.constant 1.000000e+00 : f32
    %139 = vector.broadcast %cst_46 : f32 to vector<16x32xf32>
    %140 = arith.addf %139, %138 : vector<16x32xf32>
    %141 = arith.divf %139, %140 : vector<16x32xf32>
    %142 = vector.extract_strided_slice %135 {offsets = [0, 32], sizes = [16, 32], strides = [1, 1]} : vector<16x96xf32> to vector<16x32xf32>
    %143 = arith.negf %142 : vector<16x32xf32>
    %144 = math.exp %143 : vector<16x32xf32>
    %cst_47 = arith.constant 1.000000e+00 : f32
    %145 = vector.broadcast %cst_47 : f32 to vector<16x32xf32>
    %146 = arith.addf %145, %144 : vector<16x32xf32>
    %147 = arith.divf %145, %146 : vector<16x32xf32>
    %148 = vector.extract_strided_slice %135 {offsets = [0, 64], sizes = [16, 32], strides = [1, 1]} : vector<16x96xf32> to vector<16x32xf32>
    %149 = math.tanh %148 : vector<16x32xf32>
    %150 = vector.shape_cast %3 : vector<16x1xi1> to vector<16x1xi1>
    %151 = vector.broadcast %150 : vector<16x1xi1> to vector<16x32xi1>
    %152 = arith.select %151, %129, %112 : vector<16x32xi1>, vector<16x32xf32>
    %153 = arith.mulf %141, %149 : vector<16x32xf32>
    %154 = arith.addf %153, %152 : vector<16x32xf32>
    %155 = math.tanh %154 : vector<16x32xf32>
    %156 = arith.mulf %147, %155 : vector<16x32xf32>
    %157 = vector.shape_cast %116 : vector<16x1xi1> to vector<16x1xi1>
    %158 = vector.broadcast %157 : vector<16x1xi1> to vector<16x32xi1>
    %159 = arith.select %158, %156, %109 : vector<16x32xi1>, vector<16x32xf32>
    %c0_48 = arith.constant 0 : index
    %c0_49 = arith.constant 0 : index
    %160 = vector.load %arg7[%c0_48, %c0_49] : memref<2x16xf32, #tpu.memory_space<vmem>>, vector<2x16xf32>
    %cst_50 = arith.constant dense<0.000000e+00> : vector<2x32xf32>
    %161 = tpu.matmul %160, %159, %cst_50 {dimension_numbers = #tpu.dot_dimension_numbers<[1], [0], [0], [1], [0, 0, 1, 1], [], []>} : vector<2x16xf32>, vector<16x32xf32>, vector<2x32xf32> -> vector<2x32xf32>
    %c0_51 = arith.constant 0 : index
    %c0_52 = arith.constant 0 : index
    %162 = vector.load %arg8[%c0_51, %c0_52] : memref<2x16xf32, #tpu.memory_space<vmem>>, vector<2x16xf32>
    %cst_53 = arith.constant dense<0.000000e+00> : vector<2x32xf32>
    %163 = tpu.matmul %162, %159, %cst_53 {dimension_numbers = #tpu.dot_dimension_numbers<[1], [0], [0], [1], [0, 0, 1, 1], [], []>} : vector<2x16xf32>, vector<16x32xf32>, vector<2x32xf32> -> vector<2x32xf32>
    %c0_54 = arith.constant 0 : index
    %c0_55 = arith.constant 0 : index
    %164 = vector.load %arg14[%c0_54, %c0_55] : memref<32x32xf32, #tpu.memory_space<vmem>>, vector<32x32xf32>
    %cst_56 = arith.constant dense<0.000000e+00> : vector<2x32xf32>
    %165 = tpu.matmul %161, %164, %cst_56 {dimension_numbers = #tpu.dot_dimension_numbers<[1], [0], [0], [1], [0, 0, 1, 1], [], []>} : vector<2x32xf32>, vector<32x32xf32>, vector<2x32xf32> -> vector<2x32xf32>
    %c0_57 = arith.constant 0 : index
    %c0_58 = arith.constant 0 : index
    %166 = vector.load %arg15[%c0_57, %c0_58] : memref<32x32xf32, #tpu.memory_space<vmem>>, vector<32x32xf32>
    %cst_59 = arith.constant dense<0.000000e+00> : vector<2x32xf32>
    %167 = tpu.matmul %163, %166, %cst_59 {dimension_numbers = #tpu.dot_dimension_numbers<[1], [0], [0], [1], [0, 0, 1, 1], [], []>} : vector<2x32xf32>, vector<32x32xf32>, vector<2x32xf32> -> vector<2x32xf32>
    %168 = arith.addf %165, %167 : vector<2x32xf32>
    %c0_60 = arith.constant 0 : index
    %c0_61 = arith.constant 0 : index
    %169 = vector.load %arg1[%c0_60, %c0_61] : memref<2x8xf32, #tpu.memory_space<vmem>>, vector<2x8xf32>
    %c0_62 = arith.constant 0 : index
    %c0_63 = arith.constant 0 : index
    %170 = vector.load %arg16[%c0_62, %c0_63] : memref<8x32xf32, #tpu.memory_space<vmem>>, vector<8x32xf32>
    %cst_64 = arith.constant dense<0.000000e+00> : vector<2x32xf32>
    %171 = tpu.matmul %169, %170, %cst_64 {dimension_numbers = #tpu.dot_dimension_numbers<[1], [0], [0], [1], [0, 0, 1, 1], [], []>} : vector<2x8xf32>, vector<8x32xf32>, vector<2x32xf32> -> vector<2x32xf32>
    %172 = arith.addf %168, %171 : vector<2x32xf32>
    %c0_65 = arith.constant 0 : index
    %c0_66 = arith.constant 0 : index
    %173 = vector.load %arg17[%c0_65, %c0_66] : memref<1x32xf32, #tpu.memory_space<vmem>>, vector<1x32xf32>
    %174 = vector.broadcast %173 : vector<1x32xf32> to vector<2x32xf32>
    %175 = arith.addf %172, %174 : vector<2x32xf32>
    %cst_67 = arith.constant 0.000000e+00 : f32
    %176 = vector.broadcast %cst_67 : f32 to vector<2x32xf32>
    %177 = arith.maximumf %175, %176 : vector<2x32xf32>
    %c0_68 = arith.constant 0 : index
    %c0_69 = arith.constant 0 : index
    %178 = vector.load %arg18[%c0_68, %c0_69] : memref<32x16xf32, #tpu.memory_space<vmem>>, vector<32x16xf32>
    %cst_70 = arith.constant dense<0.000000e+00> : vector<2x16xf32>
    %179 = tpu.matmul %177, %178, %cst_70 {dimension_numbers = #tpu.dot_dimension_numbers<[1], [0], [0], [1], [0, 0, 1, 1], [], []>} : vector<2x32xf32>, vector<32x16xf32>, vector<2x16xf32> -> vector<2x16xf32>
    %c0_71 = arith.constant 0 : index
    %c0_72 = arith.constant 0 : index
    %180 = vector.load %arg19[%c0_71, %c0_72] : memref<1x16xf32, #tpu.memory_space<vmem>>, vector<1x16xf32>
    %181 = vector.broadcast %180 : vector<1x16xf32> to vector<2x16xf32>
    %182 = arith.addf %179, %181 : vector<2x16xf32>
    %cst_73 = arith.constant 0.000000e+00 : f32
    %183 = vector.broadcast %cst_73 : f32 to vector<2x16xf32>
    %184 = arith.maximumf %182, %183 : vector<2x16xf32>
    %c0_74 = arith.constant 0 : index
    %c0_75 = arith.constant 0 : index
    %185 = vector.load %arg20[%c0_74, %c0_75] : memref<16x4xf32, #tpu.memory_space<vmem>>, vector<16x4xf32>
    %cst_76 = arith.constant dense<0.000000e+00> : vector<2x4xf32>
    %186 = tpu.matmul %184, %185, %cst_76 {dimension_numbers = #tpu.dot_dimension_numbers<[1], [0], [0], [1], [0, 0, 1, 1], [], []>} : vector<2x16xf32>, vector<16x4xf32>, vector<2x4xf32> -> vector<2x4xf32>
    %c0_77 = arith.constant 0 : index
    %c0_78 = arith.constant 0 : index
    %187 = vector.load %arg21[%c0_77, %c0_78] : memref<1x4xf32, #tpu.memory_space<vmem>>, vector<1x4xf32>
    %188 = vector.broadcast %187 : vector<1x4xf32> to vector<2x4xf32>
    %189 = arith.addf %186, %188 : vector<2x4xf32>
    %190 = arith.negf %189 : vector<2x4xf32>
    %191 = math.exp %190 : vector<2x4xf32>
    %cst_79 = arith.constant 1.000000e+00 : f32
    %192 = vector.broadcast %cst_79 : f32 to vector<2x4xf32>
    %193 = arith.addf %192, %191 : vector<2x4xf32>
    %194 = arith.divf %192, %193 : vector<2x4xf32>
    %c0_80 = arith.constant 0 : index
    %c0_81 = arith.constant 0 : index
    %195 = vector.load %arg22[%c0_80, %c0_81] : memref<2x4xf32, #tpu.memory_space<vmem>>, vector<2x4xf32>
    tpu.vector_store %arg22[%c0_80, %c0_81], %194 {strides = array<i32>} : memref<2x4xf32, #tpu.memory_space<vmem>>, vector<2x4xf32>,
    return
  }
}

</mosaic_0001>

<llo_original>
// kernel: tpu_custom_call.1
$region0: #{tpu_custom_call.1}
  #allocation0 [shape = 'u32[]', space=smem, size = 0x4, offset = 0x4, fixed_abs, tag = 'smem constant byte address 0x4 - core index']
  #allocation1 [shape = 'u32[144,128]{1,0:T(1,128)}', space=vmem, size = 0x12000, scoped, tag = 'internal scratch']
  %s0 = inlined_call_operand.hbm [shape: f32[16,16], index: 0, kind: input, shape index: {}]
  %s1 = inlined_call_operand.hbm [shape: f32[2,8], index: 1, kind: input, shape index: {}]
  %s2 = inlined_call_operand.hbm [shape: f32[16,32], index: 2, kind: input, shape index: {}]
  %s3 = inlined_call_operand.hbm [shape: f32[16,32], index: 3, kind: input, shape index: {}]
  %s4 = inlined_call_operand.hbm [shape: f32[16,16], index: 4, kind: input, shape index: {}]
  %s5 = inlined_call_operand.vmem [shape: f32[16,1], index: 5, kind: input, shape index: {}]
  %s6 = inlined_call_operand.vmem [shape: f32[3,16,1], index: 6, kind: input, shape index: {}]
  %s7 = inlined_call_operand.hbm [shape: f32[2,16], index: 7, kind: input, shape index: {}]
  %s8 = inlined_call_operand.hbm [shape: f32[2,16], index: 8, kind: input, shape index: {}]
  %s9 = inlined_call_operand.vmem [shape: f32[16,96], index: 9, kind: input, shape index: {}]
  %s10 = inlined_call_operand.vmem [shape: f32[32,96], index: 10, kind: input, shape index: {}]
  %s11 = inlined_call_operand.vmem [shape: f32[1,96], index: 11, kind: input, shape index: {}]
  %s12 = inlined_call_operand.vmem [shape: f32[32,32], index: 12, kind: input, shape index: {}]
  %s13 = inlined_call_operand.vmem [shape: f32[1,32], index: 13, kind: input, shape index: {}]
  %s14 = inlined_call_operand.vmem [shape: f32[32,32], index: 14, kind: input, shape index: {}]
  %s15 = inlined_call_operand.vmem [shape: f32[32,32], index: 15, kind: input, shape index: {}]
  %s16 = inlined_call_operand.vmem [shape: f32[8,32], index: 16, kind: input, shape index: {}]
  %s17 = inlined_call_operand.vmem [shape: f32[1,32], index: 17, kind: input, shape index: {}]
  %s18 = inlined_call_operand.vmem [shape: f32[32,16], index: 18, kind: input, shape index: {}]
  %s19 = inlined_call_operand.vmem [shape: f32[1,16], index: 19, kind: input, shape index: {}]
  %s20 = inlined_call_operand.vmem [shape: f32[16,4], index: 20, kind: input, shape index: {}]
  %s21 = inlined_call_operand.vmem [shape: f32[1,4], index: 21, kind: input, shape index: {}]
  %s22 = inlined_call_operand.hbm [shape: f32[2,4], index: 22, kind: output, shape index: {}]
  %s23 = sld [smem:[#allocation0]]
  $region126: #{tpu_custom_call.1} parent=0
    _
  %s25 = ssub.s32 1, %s23
  %s26 = scalar_select 0, %s25, %s23
  $region1: #{tpu_custom_call.1} parent=0
    #allocation2 [shape = 'u8[8192]{0}', space=vmem, size = 0x2000, scoped, tag = 'input window, operand 0, single buffered']
    #allocation3 [shape = 's32[1]{0}', space=sflag, size = 0x4, scoped, tag = 'scoped memory for tpu_custom_call.1']
    #allocation4 [shape = 's32[1]{0}', space=sflag, size = 0x4, scoped, tag = 'scoped memory for tpu_custom_call.1']
    #allocation5 [shape = 'u8[1024]{0}', space=vmem, size = 0x400, scoped, tag = 'input window, operand 1, single buffered']
    #allocation6 [shape = 's32[1]{0}', space=sflag, size = 0x4, scoped, tag = 'scoped memory for tpu_custom_call.1']
    #allocation7 [shape = 'u8[8192]{0}', space=vmem, size = 0x2000, scoped, tag = 'input window, operand 2, single buffered']
    #allocation8 [shape = 'u8[8192]{0}', space=vmem, size = 0x2000, scoped, tag = 'input window, operand 3, single buffered']
    #allocation9 [shape = 's32[1]{0}', space=sflag, size = 0x4, scoped, tag = 'scoped memory for tpu_custom_call.1']
    #allocation10 [shape = 'u8[8192]{0}', space=vmem, size = 0x2000, scoped, tag = 'input window, operand 4, single buffered']
    #allocation11 [shape = 'u8[1024]{0}', space=vmem, size = 0x400, scoped, tag = 'input window, operand 7, single buffered']
    #allocation12 [shape = 's32[1]{0}', space=sflag, size = 0x4, scoped, tag = 'scoped memory for tpu_custom_call.1']
    #allocation13 [shape = 'u8[1024]{0}', space=vmem, size = 0x400, scoped, tag = 'input window, operand 8, single buffered']
    #allocation14 [shape = 'u8[1024]{0}', space=vmem, size = 0x400, scoped, tag = 'output window, operand 0, single buffered']
    %27 = vsyncpa [#allocation3], 0
    %28 = vsyncpa [#allocation6], 0
    %29 = vsyncpa [#allocation9], 0
    %30 = vsyncpa [#allocation12], 0
    %31 = vsyncpa [#allocation4], 0
    // Predicated region
    $region2: #{tpu_custom_call.1} parent=1 // pred_check
      _
    $region3: #{tpu_custom_call.1} parent=1 // pred_check_branch
      %33 = sbr.rel (0) target = $region5
    $region4: #{tpu_custom_call.1} parent=1 // pred_region
      %s35 = ssub.s32 256, 256
      %36 = vsyncadd [#allocation3], %s35
      %s37 = sshll.u32 [#allocation2], 4
      %s38 = int_to_ptr.vmem [resolvable:$true] %s37
      %43 = dma.hbm_to_vmem [thread:$0]  %s0, 256, %s38, [#allocation3], 128, 128, 8
    $region5: #{tpu_custom_call.1} parent=1 // pred_fallthru
      _
    // Predicated region
    $region6: #{tpu_custom_call.1} parent=1 // pred_check
      _
    $region7: #{tpu_custom_call.1} parent=1 // pred_check_branch
      %45 = sbr.rel (0) target = $region9
    $region8: #{tpu_custom_call.1} parent=1 // pred_region
      %s47 = ssub.s32 32, 32
      %48 = vsyncadd [#allocation6], %s47
      %s50 = sshll.u32 [#allocation5], 4
      %s51 = int_to_ptr.vmem [resolvable:$true] %s50
      %53 = dma.hbm_to_vmem [thread:$0]  %s1, 32, %s51, [#allocation6]
    $region9: #{tpu_custom_call.1} parent=1 // pred_fallthru
      _
    // Predicated region
    $region10: #{tpu_custom_call.1} parent=1 // pred_check
      _
    $region11: #{tpu_custom_call.1} parent=1 // pred_check_branch
      %55 = sbr.rel (0) target = $region13
    $region12: #{tpu_custom_call.1} parent=1 // pred_region
      %s57 = ssub.s32 256, 256
      %58 = vsyncadd [#allocation6], %s57
      %s59 = sshll.u32 [#allocation7], 4
      %s60 = int_to_ptr.vmem [resolvable:$true] %s59
      %65 = dma.hbm_to_vmem [thread:$0]  %s2, 256, %s60, [#allocation6], 128, 128, 8
    $region13: #{tpu_custom_call.1} parent=1 // pred_fallthru
      _
    // Predicated region
    $region14: #{tpu_custom_call.1} parent=1 // pred_check
      _
    $region15: #{tpu_custom_call.1} parent=1 // pred_check_branch
      %67 = sbr.rel (0) target = $region17
    $region16: #{tpu_custom_call.1} parent=1 // pred_region
      %s69 = ssub.s32 256, 256
      %70 = vsyncadd [#allocation9], %s69
      %s71 = sshll.u32 [#allocation8], 4
      %s72 = int_to_ptr.vmem [resolvable:$true] %s71
      %77 = dma.hbm_to_vmem [thread:$0]  %s3, 256, %s72, [#allocation9], 128, 128, 8
    $region17: #{tpu_custom_call.1} parent=1 // pred_fallthru
      _
    // Predicated region
    $region18: #{tpu_custom_call.1} parent=1 // pred_check
      _
    $region19: #{tpu_custom_call.1} parent=1 // pred_check_branch
      %79 = sbr.rel (0) target = $region21
    $region20: #{tpu_custom_call.1} parent=1 // pred_region
      %s81 = ssub.s32 256, 256
      %82 = vsyncadd [#allocation9], %s81
      %s83 = sshll.u32 [#allocation10], 4
      %s84 = int_to_ptr.vmem [resolvable:$true] %s83
      %89 = dma.hbm_to_vmem [thread:$0]  %s4, 256, %s84, [#allocation9], 128, 128, 8
    $region21: #{tpu_custom_call.1} parent=1 // pred_fallthru
      _
    // Predicated region
    $region22: #{tpu_custom_call.1} parent=1 // pred_check
      _
    $region23: #{tpu_custom_call.1} parent=1 // pred_check_branch
      %91 = sbr.rel (0) target = $region25
    $region24: #{tpu_custom_call.1} parent=1 // pred_region
      _
    $region25: #{tpu_custom_call.1} parent=1 // pred_fallthru
      _
    // Predicated region
    $region26: #{tpu_custom_call.1} parent=1 // pred_check
      _
    $region27: #{tpu_custom_call.1} parent=1 // pred_check_branch
      %93 = sbr.rel (0) target = $region29
    $region28: #{tpu_custom_call.1} parent=1 // pred_region
      _
    $region29: #{tpu_custom_call.1} parent=1 // pred_fallthru
      _
    // Predicated region
    $region30: #{tpu_custom_call.1} parent=1 // pred_check
      _
    $region31: #{tpu_custom_call.1} parent=1 // pred_check_branch
      %95 = sbr.rel (0) target = $region33
    $region32: #{tpu_custom_call.1} parent=1 // pred_region
      %s97 = ssub.s32 32, 32
      %98 = vsyncadd [#allocation12], %s97
      %s100 = sshll.u32 [#allocation11], 4
      %s101 = int_to_ptr.vmem [resolvable:$true] %s100
      %103 = dma.hbm_to_vmem [thread:$0]  %s7, 32, %s101, [#allocation12]
    $region33: #{tpu_custom_call.1} parent=1 // pred_fallthru
      _
    // Predicated region
    $region34: #{tpu_custom_call.1} parent=1 // pred_check
      _
    $region35: #{tpu_custom_call.1} parent=1 // pred_check_branch
      %105 = sbr.rel (0) target = $region37
    $region36: #{tpu_custom_call.1} parent=1 // pred_region
      %s107 = ssub.s32 32, 32
      %108 = vsyncadd [#allocation12], %s107
      %s110 = sshll.u32 [#allocation13], 4
      %s111 = int_to_ptr.vmem [resolvable:$true] %s110
      %113 = dma.hbm_to_vmem [thread:$0]  %s8, 32, %s111, [#allocation12]
    $region37: #{tpu_custom_call.1} parent=1 // pred_fallthru
      _
    // Predicated region
    $region38: #{tpu_custom_call.1} parent=1 // pred_check
      _
    $region39: #{tpu_custom_call.1} parent=1 // pred_check_branch
      %115 = sbr.rel (0) target = $region41
    $region40: #{tpu_custom_call.1} parent=1 // pred_region
      _
    $region41: #{tpu_custom_call.1} parent=1 // pred_fallthru
      _
    // Predicated region
    $region42: #{tpu_custom_call.1} parent=1 // pred_check
      _
    $region43: #{tpu_custom_call.1} parent=1 // pred_check_branch
      %117 = sbr.rel (0) target = $region45
    $region44: #{tpu_custom_call.1} parent=1 // pred_region
      _
    $region45: #{tpu_custom_call.1} parent=1 // pred_fallthru
      _
    // Predicated region
    $region46: #{tpu_custom_call.1} parent=1 // pred_check
      _
    $region47: #{tpu_custom_call.1} parent=1 // pred_check_branch
      %119 = sbr.rel (0) target = $region49
    $region48: #{tpu_custom_call.1} parent=1 // pred_region
      _
    $region49: #{tpu_custom_call.1} parent=1 // pred_fallthru
      _
    // Predicated region
    $region50: #{tpu_custom_call.1} parent=1 // pred_check
      _
    $region51: #{tpu_custom_call.1} parent=1 // pred_check_branch
      %121 = sbr.rel (0) target = $region53
    $region52: #{tpu_custom_call.1} parent=1 // pred_region
      _
    $region53: #{tpu_custom_call.1} parent=1 // pred_fallthru
      _
    // Predicated region
    $region54: #{tpu_custom_call.1} parent=1 // pred_check
      _
    $region55: #{tpu_custom_call.1} parent=1 // pred_check_branch
      %123 = sbr.rel (0) target = $region57
    $region56: #{tpu_custom_call.1} parent=1 // pred_region
      _
    $region57: #{tpu_custom_call.1} parent=1 // pred_fallthru
      _
    // Predicated region
    $region58: #{tpu_custom_call.1} parent=1 // pred_check
      _
    $region59: #{tpu_custom_call.1} parent=1 // pred_check_branch
      %125 = sbr.rel (0) target = $region61
    $region60: #{tpu_custom_call.1} parent=1 // pred_region
      _
    $region61: #{tpu_custom_call.1} parent=1 // pred_fallthru
      _
    // Predicated region
    $region62: #{tpu_custom_call.1} parent=1 // pred_check
      _
    $region63: #{tpu_custom_call.1} parent=1 // pred_check_branch
      %127 = sbr.rel (0) target = $region65
    $region64: #{tpu_custom_call.1} parent=1 // pred_region
      _
    $region65: #{tpu_custom_call.1} parent=1 // pred_fallthru
      _
    // Predicated region
    $region66: #{tpu_custom_call.1} parent=1 // pred_check
      _
    $region67: #{tpu_custom_call.1} parent=1 // pred_check_branch
      %129 = sbr.rel (0) target = $region69
    $region68: #{tpu_custom_call.1} parent=1 // pred_region
      _
    $region69: #{tpu_custom_call.1} parent=1 // pred_fallthru
      _
    // Predicated region
    $region70: #{tpu_custom_call.1} parent=1 // pred_check
      _
    $region71: #{tpu_custom_call.1} parent=1 // pred_check_branch
      %131 = sbr.rel (0) target = $region73
    $region72: #{tpu_custom_call.1} parent=1 // pred_region
      _
    $region73: #{tpu_custom_call.1} parent=1 // pred_fallthru
      _
    // Predicated region
    $region74: #{tpu_custom_call.1} parent=1 // pred_check
      _
    $region75: #{tpu_custom_call.1} parent=1 // pred_check_branch
      %133 = sbr.rel (0) target = $region77
    $region76: #{tpu_custom_call.1} parent=1 // pred_region
      _
    $region77: #{tpu_custom_call.1} parent=1 // pred_fallthru
      _
    // Predicated region
    $region78: #{tpu_custom_call.1} parent=1 // pred_check
      _
    $region79: #{tpu_custom_call.1} parent=1 // pred_check_branch
      %135 = sbr.rel (0) target = $region81
    $region80: #{tpu_custom_call.1} parent=1 // pred_region
      _
    $region81: #{tpu_custom_call.1} parent=1 // pred_fallthru
      _
    // Predicated region
    $region82: #{tpu_custom_call.1} parent=1 // pred_check
      _
    $region83: #{tpu_custom_call.1} parent=1 // pred_check_branch
      %137 = sbr.rel (0) target = $region85
    $region84: #{tpu_custom_call.1} parent=1 // pred_region
      _
    $region85: #{tpu_custom_call.1} parent=1 // pred_fallthru
      _
    // Predicated region
    $region86: #{tpu_custom_call.1} parent=1 // pred_check
      _
    $region87: #{tpu_custom_call.1} parent=1 // pred_check_branch
      %139 = sbr.rel (0) target = $region89
    $region88: #{tpu_custom_call.1} parent=1 // pred_region
      _
    $region89: #{tpu_custom_call.1} parent=1 // pred_fallthru
      _
    // Predicated region
    $region90: #{tpu_custom_call.1} parent=1 // pred_check
      _
    $region91: #{tpu_custom_call.1} parent=1 // pred_check_branch
      %141 = sbr.rel (0) target = $region93
    $region92: #{tpu_custom_call.1} parent=1 // pred_region
      %142 = dma.done [#allocation3], 256
    $region93: #{tpu_custom_call.1} parent=1 // pred_fallthru
      _
    // Predicated region
    $region94: #{tpu_custom_call.1} parent=1 // pred_check
      _
    $region95: #{tpu_custom_call.1} parent=1 // pred_check_branch
      %144 = sbr.rel (0) target = $region97
    $region96: #{tpu_custom_call.1} parent=1 // pred_region
      %145 = dma.done [#allocation6], 32
    $region97: #{tpu_custom_call.1} parent=1 // pred_fallthru
      _
    // Predicated region
    $region98: #{tpu_custom_call.1} parent=1 // pred_check
      _
    $region99: #{tpu_custom_call.1} parent=1 // pred_check_branch
      %147 = sbr.rel (0) target = $region101
    $region100: #{tpu_custom_call.1} parent=1 // pred_region
      %148 = dma.done [#allocation6], 256
    $region101: #{tpu_custom_call.1} parent=1 // pred_fallthru
      _
    // Predicated region
    $region102: #{tpu_custom_call.1} parent=1 // pred_check
      _
    $region103: #{tpu_custom_call.1} parent=1 // pred_check_branch
      %150 = sbr.rel (0) target = $region105
    $region104: #{tpu_custom_call.1} parent=1 // pred_region
      %151 = dma.done [#allocation9], 256
    $region105: #{tpu_custom_call.1} parent=1 // pred_fallthru
      _
    // Predicated region
    $region106: #{tpu_custom_call.1} parent=1 // pred_check
      _
    $region107: #{tpu_custom_call.1} parent=1 // pred_check_branch
      %153 = sbr.rel (0) target = $region109
    $region108: #{tpu_custom_call.1} parent=1 // pred_region
      %154 = dma.done [#allocation9], 256
    $region109: #{tpu_custom_call.1} parent=1 // pred_fallthru
      _
    // Predicated region
    $region110: #{tpu_custom_call.1} parent=1 // pred_check
      _
    $region111: #{tpu_custom_call.1} parent=1 // pred_check_branch
      %156 = sbr.rel (0) target = $region113
    $region112: #{tpu_custom_call.1} parent=1 // pred_region
      %157 = dma.done [#allocation12], 32
    $region113: #{tpu_custom_call.1} parent=1 // pred_fallthru
      _
    // Predicated region
    $region114: #{tpu_custom_call.1} parent=1 // pred_check
      _
    $region115: #{tpu_custom_call.1} parent=1 // pred_check_branch
      %159 = sbr.rel (0) target = $region117
    $region116: #{tpu_custom_call.1} parent=1 // pred_region
      %160 = dma.done [#allocation12], 32
    $region117: #{tpu_custom_call.1} parent=1 // pred_fallthru
      _
    %v161 = vld [vmem:[#allocation10] sm:$0xff]
    %v162 = vld [vmem:[#allocation10 + $0x8] sm:$0xff]
    %v163 = vld [vmem:[%s5] sm:$0xff]
    %v164 = vld [vmem:[%s5 + $0x8] sm:$0xff]
    %vm165 = vcmp.gt.f32.partialorder %v163, 0.0
    %vm166 = vcmp.gt.f32.partialorder %v164, 0.0
    %v167 = vld [vmem:[#allocation2] sm:$0xff]
    %v168 = vld [vmem:[#allocation2 + $0x8] sm:$0xff]
    %v169 = vld [vmem:[%s9] sm:$0xff]
    %v170 = vld [vmem:[%s9 + $0x8] sm:$0xff]
    %vm171 = vcmask 130048
    %v173 = vsel %vm171, %v167, 0
    %v176 = vsel %vm171, %v168, 0
    %178 = vmatprep.subr.mxu0 0.0
    %179 = vmatpush1.msra.mxu0 %v169
    %180 = vmatprep.subr.mxu0 0.0
    %181 = vmatpush1.msra.mxu0 %v170
    %182 = vmatprep.subr.mxu0 0.0
    %183 = vmatpush1.msra.mxu0 0.0
    %184 = vmatprep.subr.mxu0 0.0
    %185 = vmatpush1.msra.mxu0 0.0
    %186 = vmatprep.subr.mxu0 0.0
    %187 = vmatpush1.msra.mxu0 0.0
    %188 = vmatprep.subr.mxu0 0.0
    %189 = vmatpush1.msra.mxu0 0.0
    %190 = vmatprep.subr.mxu0 0.0
    %191 = vmatpush1.msra.mxu0 0.0
    %192 = vmatprep.subr.mxu0 0.0
    %193 = vmatpush1.msra.mxu0 0.0
    %194 = vmatprep.subr.mxu0 0.0
    %195 = vmatpush1.msra.mxu0 0.0
    %196 = vmatprep.subr.mxu0 0.0
    %197 = vmatpush1.msra.mxu0 0.0
    %198 = vmatprep.subr.mxu0 0.0
    %199 = vmatpush1.msra.mxu0 0.0
    %200 = vmatprep.subr.mxu0 0.0
    %201 = vmatpush1.msra.mxu0 0.0
    %202 = vmatprep.subr.mxu0 0.0
    %203 = vmatpush1.msra.mxu0 0.0
    %204 = vmatprep.subr.mxu0 0.0
    %205 = vmatpush1.msra.mxu0 0.0
    %206 = vmatprep.subr.mxu0 0.0
    %207 = vmatpush1.msra.mxu0 0.0
    %208 = vmatprep.subr.mxu0 0.0
    %209 = vmatpush1.msra.mxu0 0.0
    %210 = vmatprep.subr.mxu0 0.0
    %211 = vmatpush1.msra.mxu0 0.0
    %212 = vmatprep.subr.mxu0 0.0
    %213 = vmatpush1.msra.mxu0 0.0
    %214 = vmatprep.subr.mxu0 0.0
    %215 = vmatpush1.msra.mxu0 0.0
    %216 = vmatprep.subr.mxu0 0.0
    %217 = vmatpush1.msra.mxu0 0.0
    %218 = vmatprep.subr.mxu0 0.0
    %219 = vmatpush1.msra.mxu0 0.0
    %220 = vmatprep.subr.mxu0 0.0
    %221 = vmatpush1.msra.mxu0 0.0
    %222 = vmatprep.subr.mxu0 0.0
    %223 = vmatpush1.msra.mxu0 0.0
    %224 = vmatprep.subr.mxu0 0.0
    %225 = vmatpush1.msra.mxu0 0.0
    %226 = vmatprep.subr.mxu0 0.0
    %227 = vmatpush1.msra.mxu0 0.0
    %228 = vmatprep.subr.mxu0 0.0
    %229 = vmatpush1.msra.mxu0 0.0
    %230 = vmatprep.subr.mxu0 0.0
    %231 = vmatpush1.msra.mxu0 0.0
    %232 = vmatprep.subr.mxu0 0.0
    %233 = vmatpush1.msra.mxu0 0.0
    %234 = vmatprep.subr.mxu0 0.0
    %235 = vmatpush1.msra.mxu0 0.0
    %236 = vmatprep.subr.mxu0 0.0
    %237 = vmatpush1.msra.mxu0 0.0
    %238 = vmatprep.subr.mxu0 0.0
    %239 = vmatpush1.msra.mxu0 0.0
    %240 = vmatprep.subr.mxu0 0.0
    %241 = vmatpush1.msra.mxu0 0.0
    %242 = vmatprep.mubr.f32.mxu0 0.0
    %243 = vmatmul.mubr.f32.gmra.mrb[0].mxu0 %v173
    %v244 = vpop.f32.mrb[0].mxu0
    %v245 = vadd.f32 0.0, %v244
    %v246 = vpop.f32.mrb[0].mxu0
    %247 = vmatprep.mubr.f32.mxu0 0.0
    %248 = vmatmul.mubr.f32.gmra.mrb[0].mxu0 %v176
    %v249 = vpop.f32.mrb[0].mxu0
    %v250 = vadd.f32 0.0, %v249
    %v251 = vpop.f32.mrb[0].mxu0
    %252 = vdwg.mxu0
    %v253 = vld [vmem:[%s10] sm:$0xff]
    %v254 = vld [vmem:[%s10 + $0x8] sm:$0xff]
    %v255 = vld [vmem:[%s10 + $0x10] sm:$0xff]
    %v256 = vld [vmem:[%s10 + $0x18] sm:$0xff]
    %v257 = vld [vmem:[%s11] sm:$0x1]
    %v258 = vld [vmem:[%s12] sm:$0xff]
    %v259 = vld [vmem:[%s12 + $0x8] sm:$0xff]
    %v260 = vld [vmem:[%s12 + $0x10] sm:$0xff]
    %v261 = vld [vmem:[%s12 + $0x18] sm:$0xff]
    %v262 = vld [vmem:[%s13] sm:$0x1]
    %v263 = vld [vmem:[#allocation7] sm:$0xff]
    %v264 = vld [vmem:[#allocation7 + $0x8] sm:$0xff]
    %v265 = vld [vmem:[#allocation8] sm:$0xff]
    %v266 = vld [vmem:[#allocation8 + $0x8] sm:$0xff]
    %v267 = vld [vmem:[%s6] sm:$0xff]
    %v268 = vld [vmem:[%s6 + $0x8] sm:$0xff]
    %vm269 = vcmp.gt.f32.partialorder %v267, 0.0
    %vm270 = vcmp.gt.f32.partialorder %v268, 0.0
    %v272 = vlaneseq
    %v273 = vshrl.u32 %v272, 7
    %v274 = vsub.s32 0, %v273
    %v275 = vrot.slane %v262, %v274
    %vm277 = vcmask 261120
    %v279 = vsel %vm277, %v263, 0
    %v282 = vsel %vm277, %v264, 0
    %284 = vmatprep.subr.mxu0 0.0
    %285 = vmatpush1.msra.mxu0 %v258
    %286 = vmatprep.subr.mxu0 0.0
    %287 = vmatpush1.msra.mxu0 %v259
    %288 = vmatprep.subr.mxu0 0.0
    %289 = vmatpush1.msra.mxu0 %v260
    %290 = vmatprep.subr.mxu0 0.0
    %291 = vmatpush1.msra.mxu0 %v261
    %292 = vmatprep.subr.mxu0 0.0
    %293 = vmatpush1.msra.mxu0 0.0
    %294 = vmatprep.subr.mxu0 0.0
    %295 = vmatpush1.msra.mxu0 0.0
    %296 = vmatprep.subr.mxu0 0.0
    %297 = vmatpush1.msra.mxu0 0.0
    %298 = vmatprep.subr.mxu0 0.0
    %299 = vmatpush1.msra.mxu0 0.0
    %300 = vmatprep.subr.mxu0 0.0
    %301 = vmatpush1.msra.mxu0 0.0
    %302 = vmatprep.subr.mxu0 0.0
    %303 = vmatpush1.msra.mxu0 0.0
    %304 = vmatprep.subr.mxu0 0.0
    %305 = vmatpush1.msra.mxu0 0.0
    %306 = vmatprep.subr.mxu0 0.0
    %307 = vmatpush1.msra.mxu0 0.0
    %308 = vmatprep.subr.mxu0 0.0
    %309 = vmatpush1.msra.mxu0 0.0
    %310 = vmatprep.subr.mxu0 0.0
    %311 = vmatpush1.msra.mxu0 0.0
    %312 = vmatprep.subr.mxu0 0.0
    %313 = vmatpush1.msra.mxu0 0.0
    %314 = vmatprep.subr.mxu0 0.0
    %315 = vmatpush1.msra.mxu0 0.0
    %316 = vmatprep.subr.mxu0 0.0
    %317 = vmatpush1.msra.mxu0 0.0
    %318 = vmatprep.subr.mxu0 0.0
    %319 = vmatpush1.msra.mxu0 0.0
    %320 = vmatprep.subr.mxu0 0.0
    %321 = vmatpush1.msra.mxu0 0.0
    %322 = vmatprep.subr.mxu0 0.0
    %323 = vmatpush1.msra.mxu0 0.0
    %324 = vmatprep.subr.mxu0 0.0
    %325 = vmatpush1.msra.mxu0 0.0
    %326 = vmatprep.subr.mxu0 0.0
    %327 = vmatpush1.msra.mxu0 0.0
    %328 = vmatprep.subr.mxu0 0.0
    %329 = vmatpush1.msra.mxu0 0.0
    %330 = vmatprep.subr.mxu0 0.0
    %331 = vmatpush1.msra.mxu0 0.0
    %332 = vmatprep.subr.mxu0 0.0
    %333 = vmatpush1.msra.mxu0 0.0
    %334 = vmatprep.subr.mxu0 0.0
    %335 = vmatpush1.msra.mxu0 0.0
    %336 = vmatprep.subr.mxu0 0.0
    %337 = vmatpush1.msra.mxu0 0.0
    %338 = vmatprep.subr.mxu0 0.0
    %339 = vmatpush1.msra.mxu0 0.0
    %340 = vmatprep.subr.mxu0 0.0
    %341 = vmatpush1.msra.mxu0 0.0
    %342 = vmatprep.subr.mxu0 0.0
    %343 = vmatpush1.msra.mxu0 0.0
    %344 = vmatprep.subr.mxu0 0.0
    %345 = vmatpush1.msra.mxu0 0.0
    %346 = vmatprep.subr.mxu0 0.0
    %347 = vmatpush1.msra.mxu0 0.0
    %348 = vmatprep.mubr.f32.mxu0 0.0
    %349 = vmatmul.mubr.f32.gmra.mrb[0].mxu0 %v279
    %v350 = vpop.f32.mrb[0].mxu0
    %v351 = vadd.f32 %v275, %v350
    %v352 = vpop.f32.mrb[0].mxu0
    %353 = vmatprep.mubr.f32.mxu0 0.0
    %354 = vmatmul.mubr.f32.gmra.mrb[0].mxu0 %v282
    %v355 = vpop.f32.mrb[0].mxu0
    %v356 = vadd.f32 %v275, %v355
    %v357 = vpop.f32.mrb[0].mxu0
    %358 = vdwg.mxu0
    %v359 = vxor.u32 %v351, 2147483648
    %v360 = vxor.u32 %v356, 2147483648
    %v361 = vmul.f32 %v359, 1.442695
    %v362 = vpow.pop %v361
    %v363 = vmul.f32 %v360, 1.442695
    %v364 = vpow.pop %v363
    %v365 = vadd.f32 %v362, 1.0
    %v366 = vadd.f32 %v364, 1.0
    %v367 = vrcp.pop %v365
    %v368 = vmul.f32 1.0, %v367
    %v369 = vrcp.pop %v366
    %v370 = vmul.f32 1.0, %v369
    %v371 = vmul.f32 %v368, %v265
    %v372 = vmul.f32 %v370, %v266
    %375 = vrot.lane.b32.xlu0 %v371, 32
    %v376 = vpop.permute.xlu0 %375
    %377 = vrot.lane.b32.xlu0 %v372, 32
    %v378 = vpop.permute.xlu0 %377
    %v381 = vsel %vm277, %v263, %v376
    %v382 = vsel %vm277, %v264, %v378
    %v384 = vsel %vm171, %v161, 0
    %v387 = vsel %vm171, %v162, 0
    %389 = vmatprep.subr.mxu0 0.0
    %390 = vmatpush1.msra.mxu0 %v381
    %391 = vmatprep.subr.mxu0 0.0
    %392 = vmatpush1.msra.mxu0 %v382
    %393 = vmatprep.subr.mxu0 0.0
    %394 = vmatpush1.msra.mxu0 0.0
    %395 = vmatprep.subr.mxu0 0.0
    %396 = vmatpush1.msra.mxu0 0.0
    %397 = vmatprep.subr.mxu0 0.0
    %398 = vmatpush1.msra.mxu0 0.0
    %399 = vmatprep.subr.mxu0 0.0
    %400 = vmatpush1.msra.mxu0 0.0
    %401 = vmatprep.subr.mxu0 0.0
    %402 = vmatpush1.msra.mxu0 0.0
    %403 = vmatprep.subr.mxu0 0.0
    %404 = vmatpush1.msra.mxu0 0.0
    %405 = vmatprep.subr.mxu0 0.0
    %406 = vmatpush1.msra.mxu0 0.0
    %407 = vmatprep.subr.mxu0 0.0
    %408 = vmatpush1.msra.mxu0 0.0
    %409 = vmatprep.subr.mxu0 0.0
    %410 = vmatpush1.msra.mxu0 0.0
    %411 = vmatprep.subr.mxu0 0.0
    %412 = vmatpush1.msra.mxu0 0.0
    %413 = vmatprep.subr.mxu0 0.0
    %414 = vmatpush1.msra.mxu0 0.0
    %415 = vmatprep.subr.mxu0 0.0
    %416 = vmatpush1.msra.mxu0 0.0
    %417 = vmatprep.subr.mxu0 0.0
    %418 = vmatpush1.msra.mxu0 0.0
    %419 = vmatprep.subr.mxu0 0.0
    %420 = vmatpush1.msra.mxu0 0.0
    %421 = vmatprep.subr.mxu0 0.0
    %422 = vmatpush1.msra.mxu0 0.0
    %423 = vmatprep.subr.mxu0 0.0
    %424 = vmatpush1.msra.mxu0 0.0
    %425 = vmatprep.subr.mxu0 0.0
    %426 = vmatpush1.msra.mxu0 0.0
    %427 = vmatprep.subr.mxu0 0.0
    %428 = vmatpush1.msra.mxu0 0.0
    %429 = vmatprep.subr.mxu0 0.0
    %430 = vmatpush1.msra.mxu0 0.0
    %431 = vmatprep.subr.mxu0 0.0
    %432 = vmatpush1.msra.mxu0 0.0
    %433 = vmatprep.subr.mxu0 0.0
    %434 = vmatpush1.msra.mxu0 0.0
    %435 = vmatprep.subr.mxu0 0.0
    %436 = vmatpush1.msra.mxu0 0.0
    %437 = vmatprep.subr.mxu0 0.0
    %438 = vmatpush1.msra.mxu0 0.0
    %439 = vmatprep.subr.mxu0 0.0
    %440 = vmatpush1.msra.mxu0 0.0
    %441 = vmatprep.subr.mxu0 0.0
    %442 = vmatpush1.msra.mxu0 0.0
    %443 = vmatprep.subr.mxu0 0.0
    %444 = vmatpush1.msra.mxu0 0.0
    %445 = vmatprep.subr.mxu0 0.0
    %446 = vmatpush1.msra.mxu0 0.0
    %447 = vmatprep.subr.mxu0 0.0
    %448 = vmatpush1.msra.mxu0 0.0
    %449 = vmatprep.subr.mxu0 0.0
    %450 = vmatpush1.msra.mxu0 0.0
    %451 = vmatprep.subr.mxu0 0.0
    %452 = vmatpush1.msra.mxu0 0.0
    %453 = vmatprep.mubr.f32.mxu0 0.0
    %454 = vmatmul.mubr.f32.gmra.mrb[0].mxu0 %v384
    %v455 = vpop.f32.mrb[0].mxu0
    %v456 = vadd.f32 0.0, %v455
    %v457 = vpop.f32.mrb[0].mxu0
    %458 = vmatprep.mubr.f32.mxu0 0.0
    %459 = vmatmul.mubr.f32.gmra.mrb[0].mxu0 %v387
    %v460 = vpop.f32.mrb[0].mxu0
    %v461 = vadd.f32 0.0, %v460
    %v462 = vpop.f32.mrb[0].mxu0
    %463 = vdwg.mxu0
    %v465 = vsel %vm277, %v456, 0
    %v468 = vsel %vm277, %v461, 0
    %470 = vmatprep.subr.mxu0 0.0
    %471 = vmatpush1.msra.mxu0 %v253
    %472 = vmatprep.subr.mxu0 0.0
    %473 = vmatpush1.msra.mxu0 %v254
    %474 = vmatprep.subr.mxu0 0.0
    %475 = vmatpush1.msra.mxu0 %v255
    %476 = vmatprep.subr.mxu0 0.0
    %477 = vmatpush1.msra.mxu0 %v256
    %478 = vmatprep.subr.mxu0 0.0
    %479 = vmatpush1.msra.mxu0 0.0
    %480 = vmatprep.subr.mxu0 0.0
    %481 = vmatpush1.msra.mxu0 0.0
    %482 = vmatprep.subr.mxu0 0.0
    %483 = vmatpush1.msra.mxu0 0.0
    %484 = vmatprep.subr.mxu0 0.0
    %485 = vmatpush1.msra.mxu0 0.0
    %486 = vmatprep.subr.mxu0 0.0
    %487 = vmatpush1.msra.mxu0 0.0
    %488 = vmatprep.subr.mxu0 0.0
    %489 = vmatpush1.msra.mxu0 0.0
    %490 = vmatprep.subr.mxu0 0.0
    %491 = vmatpush1.msra.mxu0 0.0
    %492 = vmatprep.subr.mxu0 0.0
    %493 = vmatpush1.msra.mxu0 0.0
    %494 = vmatprep.subr.mxu0 0.0
    %495 = vmatpush1.msra.mxu0 0.0
    %496 = vmatprep.subr.mxu0 0.0
    %497 = vmatpush1.msra.mxu0 0.0
    %498 = vmatprep.subr.mxu0 0.0
    %499 = vmatpush1.msra.mxu0 0.0
    %500 = vmatprep.subr.mxu0 0.0
    %501 = vmatpush1.msra.mxu0 0.0
    %502 = vmatprep.subr.mxu0 0.0
    %503 = vmatpush1.msra.mxu0 0.0
    %504 = vmatprep.subr.mxu0 0.0
    %505 = vmatpush1.msra.mxu0 0.0
    %506 = vmatprep.subr.mxu0 0.0
    %507 = vmatpush1.msra.mxu0 0.0
    %508 = vmatprep.subr.mxu0 0.0
    %509 = vmatpush1.msra.mxu0 0.0
    %510 = vmatprep.subr.mxu0 0.0
    %511 = vmatpush1.msra.mxu0 0.0
    %512 = vmatprep.subr.mxu0 0.0
    %513 = vmatpush1.msra.mxu0 0.0
    %514 = vmatprep.subr.mxu0 0.0
    %515 = vmatpush1.msra.mxu0 0.0
    %516 = vmatprep.subr.mxu0 0.0
    %517 = vmatpush1.msra.mxu0 0.0
    %518 = vmatprep.subr.mxu0 0.0
    %519 = vmatpush1.msra.mxu0 0.0
    %520 = vmatprep.subr.mxu0 0.0
    %521 = vmatpush1.msra.mxu0 0.0
    %522 = vmatprep.subr.mxu0 0.0
    %523 = vmatpush1.msra.mxu0 0.0
    %524 = vmatprep.subr.mxu0 0.0
    %525 = vmatpush1.msra.mxu0 0.0
    %526 = vmatprep.subr.mxu0 0.0
    %527 = vmatpush1.msra.mxu0 0.0
    %528 = vmatprep.subr.mxu0 0.0
    %529 = vmatpush1.msra.mxu0 0.0
    %530 = vmatprep.subr.mxu0 0.0
    %531 = vmatpush1.msra.mxu0 0.0
    %532 = vmatprep.subr.mxu0 0.0
    %533 = vmatpush1.msra.mxu0 0.0
    %534 = vmatprep.mubr.f32.mxu0 0.0
    %535 = vmatmul.mubr.f32.gmra.mrb[0].mxu0 %v465
    %v536 = vpop.f32.mrb[0].mxu0
    %v537 = vadd.f32 0.0, %v536
    %v538 = vpop.f32.mrb[0].mxu0
    %539 = vmatprep.mubr.f32.mxu0 0.0
    %540 = vmatmul.mubr.f32.gmra.mrb[0].mxu0 %v468
    %v541 = vpop.f32.mrb[0].mxu0
    %v542 = vadd.f32 0.0, %v541
    %v543 = vpop.f32.mrb[0].mxu0
    %544 = vdwg.mxu0
    %v545 = vsel %vm165, 1, 0
    %v546 = vsel %vm166, 1, 0
    %547 = vset.pattern.permute.xlu0 0
    %548 = vperm.xlu0 %547, %v545
    %v549 = vpop.permute.xlu0 %548
    %550 = vset.pattern.permute.xlu0 0
    %551 = vperm.xlu0 %550, %v546
    %v552 = vpop.permute.xlu0 %551
    %vm553 = vcmp.eq.s32.totalorder %v549, 1
    %vm554 = vcmp.eq.s32.totalorder %v552, 1
    %v555 = vsel %vm553, %v537, %v245
    %v556 = vsel %vm554, %v542, %v250
    %v558 = vlaneseq
    %v559 = vshrl.u32 %v558, 7
    %v560 = vsub.s32 0, %v559
    %v561 = vrot.slane %v257, %v560
    %v563 = vadd.f32 %v555, %v561
    %v564 = vadd.f32 %v556, %v561
    %v565 = vxor.u32 %v563, 2147483648
    %v566 = vxor.u32 %v564, 2147483648
    %v567 = vmul.f32 %v565, 1.442695
    %v568 = vpow.pop %v567
    %v569 = vmul.f32 %v566, 1.442695
    %v570 = vpow.pop %v569
    %v571 = vadd.f32 %v568, 1.0
    %v572 = vadd.f32 %v570, 1.0
    %v573 = vrcp.pop %v571
    %v574 = vmul.f32 1.0, %v573
    %v575 = vrcp.pop %v572
    %v576 = vmul.f32 1.0, %v575
    %v577 = vtanh.pop %v563
    %v578 = vtanh.pop %v564
    %581 = vrot.lane.b32.xlu0 %v265, 32
    %v582 = vpop.permute.xlu0 %581
    %583 = vrot.lane.b32.xlu0 %v266, 32
    %v584 = vpop.permute.xlu0 %583
    %v587 = vsel %vm553, %v456, %v582
    %v588 = vsel %vm554, %v461, %v584
    %591 = vrot.lane.b32.xlu0 %v577, 64
    %v592 = vpop.permute.xlu0 %591
    %593 = vrot.lane.b32.xlu0 %v578, 64
    %v594 = vpop.permute.xlu0 %593
    %v597 = vmul.f32 %v574, %v592
    %v598 = vmul.f32 %v576, %v594
    %601 = vrot.lane.b32.xlu0 %v587, 96
    %v602 = vpop.permute.xlu0 %601
    %603 = vrot.lane.b32.xlu0 %v588, 96
    %v604 = vpop.permute.xlu0 %603
    %v607 = vadd.f32 %v597, %v602
    %v608 = vadd.f32 %v598, %v604
    %v609 = vtanh.pop %v607
    %v610 = vtanh.pop %v608
    %613 = vrot.lane.b32.xlu0 %v609, 32
    %v614 = vpop.permute.xlu0 %613
    %615 = vrot.lane.b32.xlu0 %v610, 32
    %v616 = vpop.permute.xlu0 %615
    %v619 = vmul.f32 %v574, %v614
    %v620 = vmul.f32 %v576, %v616
    %v621 = vsel %vm269, 1, 0
    %v622 = vsel %vm270, 1, 0
    %623 = vset.pattern.permute.xlu0 0
    %624 = vperm.xlu0 %623, %v621
    %v625 = vpop.permute.xlu0 %624
    %626 = vset.pattern.permute.xlu0 0
    %627 = vperm.xlu0 %626, %v622
    %v628 = vpop.permute.xlu0 %627
    %vm629 = vcmp.eq.s32.totalorder %v625, 1
    %vm630 = vcmp.eq.s32.totalorder %v628, 1
    %631 = vrot.lane.b32.xlu0 %v263, 32
    %v632 = vpop.permute.xlu0 %631
    %633 = vrot.lane.b32.xlu0 %v264, 32
    %v634 = vpop.permute.xlu0 %633
    %v637 = vsel %vm629, %v619, %v632
    %v638 = vsel %vm630, %v620, %v634
    %v639 = vsel %vm629, %v607, %v265
    %v640 = vsel %vm630, %v608, %v266
    %s641 = scalar_lea.vmem %s6, 16
    %v642 = vld [vmem:[%s641] sm:$0xff]
    %v643 = vld [vmem:[%s641 + $0x8] sm:$0xff]
    %vm644 = vcmp.gt.f32.partialorder %v642, 0.0
    %vm645 = vcmp.gt.f32.partialorder %v643, 0.0
    %648 = vrot.lane.b32.xlu0 %v637, 96
    %v649 = vpop.permute.xlu0 %648
    %650 = vrot.lane.b32.xlu0 %v638, 96
    %v651 = vpop.permute.xlu0 %650
    %v652 = vsel %vm277, %v649, 0
    %v654 = vsel %vm277, %v651, 0
    %656 = vmatprep.subr.mxu0 0.0
    %657 = vmatpush1.msra.mxu0 %v258
    %658 = vmatprep.subr.mxu0 0.0
    %659 = vmatpush1.msra.mxu0 %v259
    %660 = vmatprep.subr.mxu0 0.0
    %661 = vmatpush1.msra.mxu0 %v260
    %662 = vmatprep.subr.mxu0 0.0
    %663 = vmatpush1.msra.mxu0 %v261
    %664 = vmatprep.subr.mxu0 0.0
    %665 = vmatpush1.msra.mxu0 0.0
    %666 = vmatprep.subr.mxu0 0.0
    %667 = vmatpush1.msra.mxu0 0.0
    %668 = vmatprep.subr.mxu0 0.0
    %669 = vmatpush1.msra.mxu0 0.0
    %670 = vmatprep.subr.mxu0 0.0
    %671 = vmatpush1.msra.mxu0 0.0
    %672 = vmatprep.subr.mxu0 0.0
    %673 = vmatpush1.msra.mxu0 0.0
    %674 = vmatprep.subr.mxu0 0.0
    %675 = vmatpush1.msra.mxu0 0.0
    %676 = vmatprep.subr.mxu0 0.0
    %677 = vmatpush1.msra.mxu0 0.0
    %678 = vmatprep.subr.mxu0 0.0
    %679 = vmatpush1.msra.mxu0 0.0
    %680 = vmatprep.subr.mxu0 0.0
    %681 = vmatpush1.msra.mxu0 0.0
    %682 = vmatprep.subr.mxu0 0.0
    %683 = vmatpush1.msra.mxu0 0.0
    %684 = vmatprep.subr.mxu0 0.0
    %685 = vmatpush1.msra.mxu0 0.0
    %686 = vmatprep.subr.mxu0 0.0
    %687 = vmatpush1.msra.mxu0 0.0
    %688 = vmatprep.subr.mxu0 0.0
    %689 = vmatpush1.msra.mxu0 0.0
    %690 = vmatprep.subr.mxu0 0.0
    %691 = vmatpush1.msra.mxu0 0.0
    %692 = vmatprep.subr.mxu0 0.0
    %693 = vmatpush1.msra.mxu0 0.0
    %694 = vmatprep.subr.mxu0 0.0
    %695 = vmatpush1.msra.mxu0 0.0
    %696 = vmatprep.subr.mxu0 0.0
    %697 = vmatpush1.msra.mxu0 0.0
    %698 = vmatprep.subr.mxu0 0.0
    %699 = vmatpush1.msra.mxu0 0.0
    %700 = vmatprep.subr.mxu0 0.0
    %701 = vmatpush1.msra.mxu0 0.0
    %702 = vmatprep.subr.mxu0 0.0
    %703 = vmatpush1.msra.mxu0 0.0
    %704 = vmatprep.subr.mxu0 0.0
    %705 = vmatpush1.msra.mxu0 0.0
    %706 = vmatprep.subr.mxu0 0.0
    %707 = vmatpush1.msra.mxu0 0.0
    %708 = vmatprep.subr.mxu0 0.0
    %709 = vmatpush1.msra.mxu0 0.0
    %710 = vmatprep.subr.mxu0 0.0
    %711 = vmatpush1.msra.mxu0 0.0
    %712 = vmatprep.subr.mxu0 0.0
    %713 = vmatpush1.msra.mxu0 0.0
    %714 = vmatprep.subr.mxu0 0.0
    %715 = vmatpush1.msra.mxu0 0.0
    %716 = vmatprep.subr.mxu0 0.0
    %717 = vmatpush1.msra.mxu0 0.0
    %718 = vmatprep.subr.mxu0 0.0
    %719 = vmatpush1.msra.mxu0 0.0
    %720 = vmatprep.mubr.f32.mxu0 0.0
    %721 = vmatmul.mubr.f32.gmra.mrb[0].mxu0 %v652
    %v722 = vpop.f32.mrb[0].mxu0
    %v723 = vadd.f32 %v275, %v722
    %v724 = vpop.f32.mrb[0].mxu0
    %725 = vmatprep.mubr.f32.mxu0 0.0
    %726 = vmatmul.mubr.f32.gmra.mrb[0].mxu0 %v654
    %v727 = vpop.f32.mrb[0].mxu0
    %v728 = vadd.f32 %v275, %v727
    %v729 = vpop.f32.mrb[0].mxu0
    %730 = vdwg.mxu0
    %v731 = vxor.u32 %v723, 2147483648
    %v732 = vxor.u32 %v728, 2147483648
    %v733 = vmul.f32 %v731, 1.442695
    %v734 = vpow.pop %v733
    %v735 = vmul.f32 %v732, 1.442695
    %v736 = vpow.pop %v735
    %v737 = vadd.f32 %v734, 1.0
    %v738 = vadd.f32 %v736, 1.0
    %v739 = vrcp.pop %v737
    %v740 = vmul.f32 1.0, %v739
    %v741 = vrcp.pop %v738
    %v742 = vmul.f32 1.0, %v741
    %v743 = vmul.f32 %v740, %v639
    %v744 = vmul.f32 %v742, %v640
    %749 = vrot.lane.b32.xlu0 %v743, 32
    %v750 = vpop.permute.xlu0 %749
    %751 = vrot.lane.b32.xlu0 %v744, 32
    %v752 = vpop.permute.xlu0 %751
    %v755 = vsel %vm277, %v649, %v750
    %v756 = vsel %vm277, %v651, %v752
    %757 = vmatprep.subr.mxu0 0.0
    %758 = vmatpush1.msra.mxu0 %v755
    %759 = vmatprep.subr.mxu0 0.0
    %760 = vmatpush1.msra.mxu0 %v756
    %761 = vmatprep.subr.mxu0 0.0
    %762 = vmatpush1.msra.mxu0 0.0
    %763 = vmatprep.subr.mxu0 0.0
    %764 = vmatpush1.msra.mxu0 0.0
    %765 = vmatprep.subr.mxu0 0.0
    %766 = vmatpush1.msra.mxu0 0.0
    %767 = vmatprep.subr.mxu0 0.0
    %768 = vmatpush1.msra.mxu0 0.0
    %769 = vmatprep.subr.mxu0 0.0
    %770 = vmatpush1.msra.mxu0 0.0
    %771 = vmatprep.subr.mxu0 0.0
    %772 = vmatpush1.msra.mxu0 0.0
    %773 = vmatprep.subr.mxu0 0.0
    %774 = vmatpush1.msra.mxu0 0.0
    %775 = vmatprep.subr.mxu0 0.0
    %776 = vmatpush1.msra.mxu0 0.0
    %777 = vmatprep.subr.mxu0 0.0
    %778 = vmatpush1.msra.mxu0 0.0
    %779 = vmatprep.subr.mxu0 0.0
    %780 = vmatpush1.msra.mxu0 0.0
    %781 = vmatprep.subr.mxu0 0.0
    %782 = vmatpush1.msra.mxu0 0.0
    %783 = vmatprep.subr.mxu0 0.0
    %784 = vmatpush1.msra.mxu0 0.0
    %785 = vmatprep.subr.mxu0 0.0
    %786 = vmatpush1.msra.mxu0 0.0
    %787 = vmatprep.subr.mxu0 0.0
    %788 = vmatpush1.msra.mxu0 0.0
    %789 = vmatprep.subr.mxu0 0.0
    %790 = vmatpush1.msra.mxu0 0.0
    %791 = vmatprep.subr.mxu0 0.0
    %792 = vmatpush1.msra.mxu0 0.0
    %793 = vmatprep.subr.mxu0 0.0
    %794 = vmatpush1.msra.mxu0 0.0
    %795 = vmatprep.subr.mxu0 0.0
    %796 = vmatpush1.msra.mxu0 0.0
    %797 = vmatprep.subr.mxu0 0.0
    %798 = vmatpush1.msra.mxu0 0.0
    %799 = vmatprep.subr.mxu0 0.0
    %800 = vmatpush1.msra.mxu0 0.0
    %801 = vmatprep.subr.mxu0 0.0
    %802 = vmatpush1.msra.mxu0 0.0
    %803 = vmatprep.subr.mxu0 0.0
    %804 = vmatpush1.msra.mxu0 0.0
    %805 = vmatprep.subr.mxu0 0.0
    %806 = vmatpush1.msra.mxu0 0.0
    %807 = vmatprep.subr.mxu0 0.0
    %808 = vmatpush1.msra.mxu0 0.0
    %809 = vmatprep.subr.mxu0 0.0
    %810 = vmatpush1.msra.mxu0 0.0
    %811 = vmatprep.subr.mxu0 0.0
    %812 = vmatpush1.msra.mxu0 0.0
    %813 = vmatprep.subr.mxu0 0.0
    %814 = vmatpush1.msra.mxu0 0.0
    %815 = vmatprep.subr.mxu0 0.0
    %816 = vmatpush1.msra.mxu0 0.0
    %817 = vmatprep.subr.mxu0 0.0
    %818 = vmatpush1.msra.mxu0 0.0
    %819 = vmatprep.subr.mxu0 0.0
    %820 = vmatpush1.msra.mxu0 0.0
    %821 = vmatprep.mubr.f32.mxu0 0.0
    %822 = vmatmul.mubr.f32.gmra.mrb[0].mxu0 %v384
    %v823 = vpop.f32.mrb[0].mxu0
    %v824 = vadd.f32 0.0, %v823
    %v825 = vpop.f32.mrb[0].mxu0
    %826 = vmatprep.mubr.f32.mxu0 0.0
    %827 = vmatmul.mubr.f32.gmra.mrb[0].mxu0 %v387
    %v828 = vpop.f32.mrb[0].mxu0
    %v829 = vadd.f32 0.0, %v828
    %v830 = vpop.f32.mrb[0].mxu0
    %831 = vdwg.mxu0
    %v833 = vsel %vm277, %v824, 0
    %v836 = vsel %vm277, %v829, 0
    %838 = vmatprep.subr.mxu0 0.0
    %839 = vmatpush1.msra.mxu0 %v253
    %840 = vmatprep.subr.mxu0 0.0
    %841 = vmatpush1.msra.mxu0 %v254
    %842 = vmatprep.subr.mxu0 0.0
    %843 = vmatpush1.msra.mxu0 %v255
    %844 = vmatprep.subr.mxu0 0.0
    %845 = vmatpush1.msra.mxu0 %v256
    %846 = vmatprep.subr.mxu0 0.0
    %847 = vmatpush1.msra.mxu0 0.0
    %848 = vmatprep.subr.mxu0 0.0
    %849 = vmatpush1.msra.mxu0 0.0
    %850 = vmatprep.subr.mxu0 0.0
    %851 = vmatpush1.msra.mxu0 0.0
    %852 = vmatprep.subr.mxu0 0.0
    %853 = vmatpush1.msra.mxu0 0.0
    %854 = vmatprep.subr.mxu0 0.0
    %855 = vmatpush1.msra.mxu0 0.0
    %856 = vmatprep.subr.mxu0 0.0
    %857 = vmatpush1.msra.mxu0 0.0
    %858 = vmatprep.subr.mxu0 0.0
    %859 = vmatpush1.msra.mxu0 0.0
    %860 = vmatprep.subr.mxu0 0.0
    %861 = vmatpush1.msra.mxu0 0.0
    %862 = vmatprep.subr.mxu0 0.0
    %863 = vmatpush1.msra.mxu0 0.0
    %864 = vmatprep.subr.mxu0 0.0
    %865 = vmatpush1.msra.mxu0 0.0
    %866 = vmatprep.subr.mxu0 0.0
    %867 = vmatpush1.msra.mxu0 0.0
    %868 = vmatprep.subr.mxu0 0.0
    %869 = vmatpush1.msra.mxu0 0.0
    %870 = vmatprep.subr.mxu0 0.0
    %871 = vmatpush1.msra.mxu0 0.0
    %872 = vmatprep.subr.mxu0 0.0
    %873 = vmatpush1.msra.mxu0 0.0
    %874 = vmatprep.subr.mxu0 0.0
    %875 = vmatpush1.msra.mxu0 0.0
    %876 = vmatprep.subr.mxu0 0.0
    %877 = vmatpush1.msra.mxu0 0.0
    %878 = vmatprep.subr.mxu0 0.0
    %879 = vmatpush1.msra.mxu0 0.0
    %880 = vmatprep.subr.mxu0 0.0
    %881 = vmatpush1.msra.mxu0 0.0
    %882 = vmatprep.subr.mxu0 0.0
    %883 = vmatpush1.msra.mxu0 0.0
    %884 = vmatprep.subr.mxu0 0.0
    %885 = vmatpush1.msra.mxu0 0.0
    %886 = vmatprep.subr.mxu0 0.0
    %887 = vmatpush1.msra.mxu0 0.0
    %888 = vmatprep.subr.mxu0 0.0
    %889 = vmatpush1.msra.mxu0 0.0
    %890 = vmatprep.subr.mxu0 0.0
    %891 = vmatpush1.msra.mxu0 0.0
    %892 = vmatprep.subr.mxu0 0.0
    %893 = vmatpush1.msra.mxu0 0.0
    %894 = vmatprep.subr.mxu0 0.0
    %895 = vmatpush1.msra.mxu0 0.0
    %896 = vmatprep.subr.mxu0 0.0
    %897 = vmatpush1.msra.mxu0 0.0
    %898 = vmatprep.subr.mxu0 0.0
    %899 = vmatpush1.msra.mxu0 0.0
    %900 = vmatprep.subr.mxu0 0.0
    %901 = vmatpush1.msra.mxu0 0.0
    %902 = vmatprep.mubr.f32.mxu0 0.0
    %903 = vmatmul.mubr.f32.gmra.mrb[0].mxu0 %v833
    %v904 = vpop.f32.mrb[0].mxu0
    %v905 = vadd.f32 0.0, %v904
    %v906 = vpop.f32.mrb[0].mxu0
    %907 = vmatprep.mubr.f32.mxu0 0.0
    %908 = vmatmul.mubr.f32.gmra.mrb[0].mxu0 %v836
    %v909 = vpop.f32.mrb[0].mxu0
    %v910 = vadd.f32 0.0, %v909
    %v911 = vpop.f32.mrb[0].mxu0
    %912 = vdwg.mxu0
    %v913 = vsel %vm553, %v905, %v245
    %v914 = vsel %vm554, %v910, %v250
    %v915 = vadd.f32 %v913, %v561
    %v916 = vadd.f32 %v914, %v561
    %v917 = vxor.u32 %v915, 2147483648
    %v918 = vxor.u32 %v916, 2147483648
    %v919 = vmul.f32 %v917, 1.442695
    %v920 = vpow.pop %v919
    %v921 = vmul.f32 %v918, 1.442695
    %v922 = vpow.pop %v921
    %v923 = vadd.f32 %v920, 1.0
    %v924 = vadd.f32 %v922, 1.0
    %v925 = vrcp.pop %v923
    %v926 = vmul.f32 1.0, %v925
    %v927 = vrcp.pop %v924
    %v928 = vmul.f32 1.0, %v927
    %v929 = vtanh.pop %v915
    %v930 = vtanh.pop %v916
    %933 = vrot.lane.b32.xlu0 %v639, 32
    %v934 = vpop.permute.xlu0 %933
    %935 = vrot.lane.b32.xlu0 %v640, 32
    %v936 = vpop.permute.xlu0 %935
    %v939 = vsel %vm553, %v824, %v934
    %v940 = vsel %vm554, %v829, %v936
    %943 = vrot.lane.b32.xlu0 %v929, 64
    %v944 = vpop.permute.xlu0 %943
    %945 = vrot.lane.b32.xlu0 %v930, 64
    %v946 = vpop.permute.xlu0 %945
    %v949 = vmul.f32 %v926, %v944
    %v950 = vmul.f32 %v928, %v946
    %953 = vrot.lane.b32.xlu0 %v939, 96
    %v954 = vpop.permute.xlu0 %953
    %955 = vrot.lane.b32.xlu0 %v940, 96
    %v956 = vpop.permute.xlu0 %955
    %v959 = vadd.f32 %v949, %v954
    %v960 = vadd.f32 %v950, %v956
    %v961 = vtanh.pop %v959
    %v962 = vtanh.pop %v960
    %965 = vrot.lane.b32.xlu0 %v961, 32
    %v966 = vpop.permute.xlu0 %965
    %967 = vrot.lane.b32.xlu0 %v962, 32
    %v968 = vpop.permute.xlu0 %967
    %v971 = vmul.f32 %v926, %v966
    %v972 = vmul.f32 %v928, %v968
    %v973 = vsel %vm644, 1, 0
    %v974 = vsel %vm645, 1, 0
    %975 = vset.pattern.permute.xlu0 0
    %976 = vperm.xlu0 %975, %v973
    %v977 = vpop.permute.xlu0 %976
    %978 = vset.pattern.permute.xlu0 0
    %979 = vperm.xlu0 %978, %v974
    %v980 = vpop.permute.xlu0 %979
    %vm981 = vcmp.eq.s32.totalorder %v977, 1
    %vm982 = vcmp.eq.s32.totalorder %v980, 1
    %v983 = vsel %vm981, %v971, %v637
    %v984 = vsel %vm982, %v972, %v638
    %v985 = vsel %vm981, %v959, %v639
    %v986 = vsel %vm982, %v960, %v640
    %s987 = scalar_lea.vmem %s6, 32
    %v988 = vld [vmem:[%s987] sm:$0xff]
    %v989 = vld [vmem:[%s987 + $0x8] sm:$0xff]
    %vm990 = vcmp.gt.f32.partialorder %v988, 0.0
    %vm991 = vcmp.gt.f32.partialorder %v989, 0.0
    %994 = vrot.lane.b32.xlu0 %v983, 96
    %v995 = vpop.permute.xlu0 %994
    %996 = vrot.lane.b32.xlu0 %v984, 96
    %v997 = vpop.permute.xlu0 %996
    %v998 = vsel %vm277, %v995, 0
    %v1000 = vsel %vm277, %v997, 0
    %1002 = vmatprep.subr.mxu0 0.0
    %1003 = vmatpush1.msra.mxu0 %v258
    %1004 = vmatprep.subr.mxu0 0.0
    %1005 = vmatpush1.msra.mxu0 %v259
    %1006 = vmatprep.subr.mxu0 0.0
    %1007 = vmatpush1.msra.mxu0 %v260
    %1008 = vmatprep.subr.mxu0 0.0
    %1009 = vmatpush1.msra.mxu0 %v261
    %1010 = vmatprep.subr.mxu0 0.0
    %1011 = vmatpush1.msra.mxu0 0.0
    %1012 = vmatprep.subr.mxu0 0.0
    %1013 = vmatpush1.msra.mxu0 0.0
    %1014 = vmatprep.subr.mxu0 0.0
    %1015 = vmatpush1.msra.mxu0 0.0
    %1016 = vmatprep.subr.mxu0 0.0
    %1017 = vmatpush1.msra.mxu0 0.0
    %1018 = vmatprep.subr.mxu0 0.0
    %1019 = vmatpush1.msra.mxu0 0.0
    %1020 = vmatprep.subr.mxu0 0.0
    %1021 = vmatpush1.msra.mxu0 0.0
    %1022 = vmatprep.subr.mxu0 0.0
    %1023 = vmatpush1.msra.mxu0 0.0
    %1024 = vmatprep.subr.mxu0 0.0
    %1025 = vmatpush1.msra.mxu0 0.0
    %1026 = vmatprep.subr.mxu0 0.0
    %1027 = vmatpush1.msra.mxu0 0.0
    %1028 = vmatprep.subr.mxu0 0.0
    %1029 = vmatpush1.msra.mxu0 0.0
    %1030 = vmatprep.subr.mxu0 0.0
    %1031 = vmatpush1.msra.mxu0 0.0
    %1032 = vmatprep.subr.mxu0 0.0
    %1033 = vmatpush1.msra.mxu0 0.0
    %1034 = vmatprep.subr.mxu0 0.0
    %1035 = vmatpush1.msra.mxu0 0.0
    %1036 = vmatprep.subr.mxu0 0.0
    %1037 = vmatpush1.msra.mxu0 0.0
    %1038 = vmatprep.subr.mxu0 0.0
    %1039 = vmatpush1.msra.mxu0 0.0
    %1040 = vmatprep.subr.mxu0 0.0
    %1041 = vmatpush1.msra.mxu0 0.0
    %1042 = vmatprep.subr.mxu0 0.0
    %1043 = vmatpush1.msra.mxu0 0.0
    %1044 = vmatprep.subr.mxu0 0.0
    %1045 = vmatpush1.msra.mxu0 0.0
    %1046 = vmatprep.subr.mxu0 0.0
    %1047 = vmatpush1.msra.mxu0 0.0
    %1048 = vmatprep.subr.mxu0 0.0
    %1049 = vmatpush1.msra.mxu0 0.0
    %1050 = vmatprep.subr.mxu0 0.0
    %1051 = vmatpush1.msra.mxu0 0.0
    %1052 = vmatprep.subr.mxu0 0.0
    %1053 = vmatpush1.msra.mxu0 0.0
    %1054 = vmatprep.subr.mxu0 0.0
    %1055 = vmatpush1.msra.mxu0 0.0
    %1056 = vmatprep.subr.mxu0 0.0
    %1057 = vmatpush1.msra.mxu0 0.0
    %1058 = vmatprep.subr.mxu0 0.0
    %1059 = vmatpush1.msra.mxu0 0.0
    %1060 = vmatprep.subr.mxu0 0.0
    %1061 = vmatpush1.msra.mxu0 0.0
    %1062 = vmatprep.subr.mxu0 0.0
    %1063 = vmatpush1.msra.mxu0 0.0
    %1064 = vmatprep.subr.mxu0 0.0
    %1065 = vmatpush1.msra.mxu0 0.0
    %1066 = vmatprep.mubr.f32.mxu0 0.0
    %1067 = vmatmul.mubr.f32.gmra.mrb[0].mxu0 %v998
    %v1068 = vpop.f32.mrb[0].mxu0
    %v1069 = vadd.f32 %v275, %v1068
    %v1070 = vpop.f32.mrb[0].mxu0
    %1071 = vmatprep.mubr.f32.mxu0 0.0
    %1072 = vmatmul.mubr.f32.gmra.mrb[0].mxu0 %v1000
    %v1073 = vpop.f32.mrb[0].mxu0
    %v1074 = vadd.f32 %v275, %v1073
    %v1075 = vpop.f32.mrb[0].mxu0
    %1076 = vdwg.mxu0
    %v1077 = vxor.u32 %v1069, 2147483648
    %v1078 = vxor.u32 %v1074, 2147483648
    %v1079 = vmul.f32 %v1077, 1.442695
    %v1080 = vpow.pop %v1079
    %v1081 = vmul.f32 %v1078, 1.442695
    %v1082 = vpow.pop %v1081
    %v1083 = vadd.f32 %v1080, 1.0
    %v1084 = vadd.f32 %v1082, 1.0
    %v1085 = vrcp.pop %v1083
    %v1086 = vmul.f32 1.0, %v1085
    %v1087 = vrcp.pop %v1084
    %v1088 = vmul.f32 1.0, %v1087
    %v1089 = vmul.f32 %v1086, %v985
    %v1090 = vmul.f32 %v1088, %v986
    %1095 = vrot.lane.b32.xlu0 %v1089, 32
    %v1096 = vpop.permute.xlu0 %1095
    %1097 = vrot.lane.b32.xlu0 %v1090, 32
    %v1098 = vpop.permute.xlu0 %1097
    %v1101 = vsel %vm277, %v995, %v1096
    %v1102 = vsel %vm277, %v997, %v1098
    %1103 = vmatprep.subr.mxu0 0.0
    %1104 = vmatpush1.msra.mxu0 %v1101
    %1105 = vmatprep.subr.mxu0 0.0
    %1106 = vmatpush1.msra.mxu0 %v1102
    %1107 = vmatprep.subr.mxu0 0.0
    %1108 = vmatpush1.msra.mxu0 0.0
    %1109 = vmatprep.subr.mxu0 0.0
    %1110 = vmatpush1.msra.mxu0 0.0
    %1111 = vmatprep.subr.mxu0 0.0
    %1112 = vmatpush1.msra.mxu0 0.0
    %1113 = vmatprep.subr.mxu0 0.0
    %1114 = vmatpush1.msra.mxu0 0.0
    %1115 = vmatprep.subr.mxu0 0.0
    %1116 = vmatpush1.msra.mxu0 0.0
    %1117 = vmatprep.subr.mxu0 0.0
    %1118 = vmatpush1.msra.mxu0 0.0
    %1119 = vmatprep.subr.mxu0 0.0
    %1120 = vmatpush1.msra.mxu0 0.0
    %1121 = vmatprep.subr.mxu0 0.0
    %1122 = vmatpush1.msra.mxu0 0.0
    %1123 = vmatprep.subr.mxu0 0.0
    %1124 = vmatpush1.msra.mxu0 0.0
    %1125 = vmatprep.subr.mxu0 0.0
    %1126 = vmatpush1.msra.mxu0 0.0
    %1127 = vmatprep.subr.mxu0 0.0
    %1128 = vmatpush1.msra.mxu0 0.0
    %1129 = vmatprep.subr.mxu0 0.0
    %1130 = vmatpush1.msra.mxu0 0.0
    %1131 = vmatprep.subr.mxu0 0.0
    %1132 = vmatpush1.msra.mxu0 0.0
    %1133 = vmatprep.subr.mxu0 0.0
    %1134 = vmatpush1.msra.mxu0 0.0
    %1135 = vmatprep.subr.mxu0 0.0
    %1136 = vmatpush1.msra.mxu0 0.0
    %1137 = vmatprep.subr.mxu0 0.0
    %1138 = vmatpush1.msra.mxu0 0.0
    %1139 = vmatprep.subr.mxu0 0.0
    %1140 = vmatpush1.msra.mxu0 0.0
    %1141 = vmatprep.subr.mxu0 0.0
    %1142 = vmatpush1.msra.mxu0 0.0
    %1143 = vmatprep.subr.mxu0 0.0
    %1144 = vmatpush1.msra.mxu0 0.0
    %1145 = vmatprep.subr.mxu0 0.0
    %1146 = vmatpush1.msra.mxu0 0.0
    %1147 = vmatprep.subr.mxu0 0.0
    %1148 = vmatpush1.msra.mxu0 0.0
    %1149 = vmatprep.subr.mxu0 0.0
    %1150 = vmatpush1.msra.mxu0 0.0
    %1151 = vmatprep.subr.mxu0 0.0
    %1152 = vmatpush1.msra.mxu0 0.0
    %1153 = vmatprep.subr.mxu0 0.0
    %1154 = vmatpush1.msra.mxu0 0.0
    %1155 = vmatprep.subr.mxu0 0.0
    %1156 = vmatpush1.msra.mxu0 0.0
    %1157 = vmatprep.subr.mxu0 0.0
    %1158 = vmatpush1.msra.mxu0 0.0
    %1159 = vmatprep.subr.mxu0 0.0
    %1160 = vmatpush1.msra.mxu0 0.0
    %1161 = vmatprep.subr.mxu0 0.0
    %1162 = vmatpush1.msra.mxu0 0.0
    %1163 = vmatprep.subr.mxu0 0.0
    %1164 = vmatpush1.msra.mxu0 0.0
    %1165 = vmatprep.subr.mxu0 0.0
    %1166 = vmatpush1.msra.mxu0 0.0
    %1167 = vmatprep.mubr.f32.mxu0 0.0
    %1168 = vmatmul.mubr.f32.gmra.mrb[0].mxu0 %v384
    %v1169 = vpop.f32.mrb[0].mxu0
    %v1170 = vadd.f32 0.0, %v1169
    %v1171 = vpop.f32.mrb[0].mxu0
    %1172 = vmatprep.mubr.f32.mxu0 0.0
    %1173 = vmatmul.mubr.f32.gmra.mrb[0].mxu0 %v387
    %v1174 = vpop.f32.mrb[0].mxu0
    %v1175 = vadd.f32 0.0, %v1174
    %v1176 = vpop.f32.mrb[0].mxu0
    %1177 = vdwg.mxu0
    %v1179 = vsel %vm277, %v1170, 0
    %v1182 = vsel %vm277, %v1175, 0
    %1184 = vmatprep.subr.mxu0 0.0
    %1185 = vmatpush1.msra.mxu0 %v253
    %1186 = vmatprep.subr.mxu0 0.0
    %1187 = vmatpush1.msra.mxu0 %v254
    %1188 = vmatprep.subr.mxu0 0.0
    %1189 = vmatpush1.msra.mxu0 %v255
    %1190 = vmatprep.subr.mxu0 0.0
    %1191 = vmatpush1.msra.mxu0 %v256
    %1192 = vmatprep.subr.mxu0 0.0
    %1193 = vmatpush1.msra.mxu0 0.0
    %1194 = vmatprep.subr.mxu0 0.0
    %1195 = vmatpush1.msra.mxu0 0.0
    %1196 = vmatprep.subr.mxu0 0.0
    %1197 = vmatpush1.msra.mxu0 0.0
    %1198 = vmatprep.subr.mxu0 0.0
    %1199 = vmatpush1.msra.mxu0 0.0
    %1200 = vmatprep.subr.mxu0 0.0
    %1201 = vmatpush1.msra.mxu0 0.0
    %1202 = vmatprep.subr.mxu0 0.0
    %1203 = vmatpush1.msra.mxu0 0.0
    %1204 = vmatprep.subr.mxu0 0.0
    %1205 = vmatpush1.msra.mxu0 0.0
    %1206 = vmatprep.subr.mxu0 0.0
    %1207 = vmatpush1.msra.mxu0 0.0
    %1208 = vmatprep.subr.mxu0 0.0
    %1209 = vmatpush1.msra.mxu0 0.0
    %1210 = vmatprep.subr.mxu0 0.0
    %1211 = vmatpush1.msra.mxu0 0.0
    %1212 = vmatprep.subr.mxu0 0.0
    %1213 = vmatpush1.msra.mxu0 0.0
    %1214 = vmatprep.subr.mxu0 0.0
    %1215 = vmatpush1.msra.mxu0 0.0
    %1216 = vmatprep.subr.mxu0 0.0
    %1217 = vmatpush1.msra.mxu0 0.0
    %1218 = vmatprep.subr.mxu0 0.0
    %1219 = vmatpush1.msra.mxu0 0.0
    %1220 = vmatprep.subr.mxu0 0.0
    %1221 = vmatpush1.msra.mxu0 0.0
    %1222 = vmatprep.subr.mxu0 0.0
    %1223 = vmatpush1.msra.mxu0 0.0
    %1224 = vmatprep.subr.mxu0 0.0
    %1225 = vmatpush1.msra.mxu0 0.0
    %1226 = vmatprep.subr.mxu0 0.0
    %1227 = vmatpush1.msra.mxu0 0.0
    %1228 = vmatprep.subr.mxu0 0.0
    %1229 = vmatpush1.msra.mxu0 0.0
    %1230 = vmatprep.subr.mxu0 0.0
    %1231 = vmatpush1.msra.mxu0 0.0
    %1232 = vmatprep.subr.mxu0 0.0
    %1233 = vmatpush1.msra.mxu0 0.0
    %1234 = vmatprep.subr.mxu0 0.0
    %1235 = vmatpush1.msra.mxu0 0.0
    %1236 = vmatprep.subr.mxu0 0.0
    %1237 = vmatpush1.msra.mxu0 0.0
    %1238 = vmatprep.subr.mxu0 0.0
    %1239 = vmatpush1.msra.mxu0 0.0
    %1240 = vmatprep.subr.mxu0 0.0
    %1241 = vmatpush1.msra.mxu0 0.0
    %1242 = vmatprep.subr.mxu0 0.0
    %1243 = vmatpush1.msra.mxu0 0.0
    %1244 = vmatprep.subr.mxu0 0.0
    %1245 = vmatpush1.msra.mxu0 0.0
    %1246 = vmatprep.subr.mxu0 0.0
    %1247 = vmatpush1.msra.mxu0 0.0
    %1248 = vmatprep.mubr.f32.mxu0 0.0
    %1249 = vmatmul.mubr.f32.gmra.mrb[0].mxu0 %v1179
    %v1250 = vpop.f32.mrb[0].mxu0
    %v1251 = vadd.f32 0.0, %v1250
    %v1252 = vpop.f32.mrb[0].mxu0
    %1253 = vmatprep.mubr.f32.mxu0 0.0
    %1254 = vmatmul.mubr.f32.gmra.mrb[0].mxu0 %v1182
    %v1255 = vpop.f32.mrb[0].mxu0
    %v1256 = vadd.f32 0.0, %v1255
    %v1257 = vpop.f32.mrb[0].mxu0
    %1258 = vdwg.mxu0
    %v1259 = vsel %vm553, %v1251, %v245
    %v1260 = vsel %vm554, %v1256, %v250
    %v1261 = vadd.f32 %v1259, %v561
    %v1262 = vadd.f32 %v1260, %v561
    %v1263 = vxor.u32 %v1261, 2147483648
    %v1264 = vxor.u32 %v1262, 2147483648
    %v1265 = vmul.f32 %v1263, 1.442695
    %v1266 = vpow.pop %v1265
    %v1267 = vmul.f32 %v1264, 1.442695
    %v1268 = vpow.pop %v1267
    %v1269 = vadd.f32 %v1266, 1.0
    %v1270 = vadd.f32 %v1268, 1.0
    %v1271 = vrcp.pop %v1269
    %v1272 = vmul.f32 1.0, %v1271
    %v1273 = vrcp.pop %v1270
    %v1274 = vmul.f32 1.0, %v1273
    %v1275 = vtanh.pop %v1261
    %v1276 = vtanh.pop %v1262
    %1279 = vrot.lane.b32.xlu0 %v985, 32
    %v1280 = vpop.permute.xlu0 %1279
    %1281 = vrot.lane.b32.xlu0 %v986, 32
    %v1282 = vpop.permute.xlu0 %1281
    %v1285 = vsel %vm553, %v1170, %v1280
    %v1286 = vsel %vm554, %v1175, %v1282
    %1289 = vrot.lane.b32.xlu0 %v1275, 64
    %v1290 = vpop.permute.xlu0 %1289
    %1291 = vrot.lane.b32.xlu0 %v1276, 64
    %v1292 = vpop.permute.xlu0 %1291
    %v1295 = vmul.f32 %v1272, %v1290
    %v1296 = vmul.f32 %v1274, %v1292
    %1299 = vrot.lane.b32.xlu0 %v1285, 96
    %v1300 = vpop.permute.xlu0 %1299
    %1301 = vrot.lane.b32.xlu0 %v1286, 96
    %v1302 = vpop.permute.xlu0 %1301
    %v1305 = vadd.f32 %v1295, %v1300
    %v1306 = vadd.f32 %v1296, %v1302
    %v1307 = vtanh.pop %v1305
    %v1308 = vtanh.pop %v1306
    %1311 = vrot.lane.b32.xlu0 %v1307, 32
    %v1312 = vpop.permute.xlu0 %1311
    %1313 = vrot.lane.b32.xlu0 %v1308, 32
    %v1314 = vpop.permute.xlu0 %1313
    %v1317 = vmul.f32 %v1272, %v1312
    %v1318 = vmul.f32 %v1274, %v1314
    %v1319 = vsel %vm990, 1, 0
    %v1320 = vsel %vm991, 1, 0
    %1321 = vset.pattern.permute.xlu0 0
    %1322 = vperm.xlu0 %1321, %v1319
    %v1323 = vpop.permute.xlu0 %1322
    %1324 = vset.pattern.permute.xlu0 0
    %1325 = vperm.xlu0 %1324, %v1320
    %v1326 = vpop.permute.xlu0 %1325
    %vm1327 = vcmp.eq.s32.totalorder %v1323, 1
    %vm1328 = vcmp.eq.s32.totalorder %v1326, 1
    %v1329 = vsel %vm1327, %v1317, %v983
    %v1330 = vsel %vm1328, %v1318, %v984
    %v1331 = vld [vmem:[#allocation11] sm:$0x3]
    %1334 = vrot.lane.b32.xlu0 %v1329, 96
    %v1335 = vpop.permute.xlu0 %1334
    %1336 = vrot.lane.b32.xlu0 %v1330, 96
    %v1337 = vpop.permute.xlu0 %1336
    %v1341 = vsel %vm171, %v1331, 0
    %1343 = vmatprep.subr.mxu0 0.0
    %1344 = vmatpush1.msra.mxu0 %v1335
    %1345 = vmatprep.subr.mxu0 0.0
    %1346 = vmatpush1.msra.mxu0 %v1337
    %1347 = vmatprep.subr.mxu0 0.0
    %1348 = vmatpush1.msra.mxu0 0.0
    %1349 = vmatprep.subr.mxu0 0.0
    %1350 = vmatpush1.msra.mxu0 0.0
    %1351 = vmatprep.subr.mxu0 0.0
    %1352 = vmatpush1.msra.mxu0 0.0
    %1353 = vmatprep.subr.mxu0 0.0
    %1354 = vmatpush1.msra.mxu0 0.0
    %1355 = vmatprep.subr.mxu0 0.0
    %1356 = vmatpush1.msra.mxu0 0.0
    %1357 = vmatprep.subr.mxu0 0.0
    %1358 = vmatpush1.msra.mxu0 0.0
    %1359 = vmatprep.subr.mxu0 0.0
    %1360 = vmatpush1.msra.mxu0 0.0
    %1361 = vmatprep.subr.mxu0 0.0
    %1362 = vmatpush1.msra.mxu0 0.0
    %1363 = vmatprep.subr.mxu0 0.0
    %1364 = vmatpush1.msra.mxu0 0.0
    %1365 = vmatprep.subr.mxu0 0.0
    %1366 = vmatpush1.msra.mxu0 0.0
    %1367 = vmatprep.subr.mxu0 0.0
    %1368 = vmatpush1.msra.mxu0 0.0
    %1369 = vmatprep.subr.mxu0 0.0
    %1370 = vmatpush1.msra.mxu0 0.0
    %1371 = vmatprep.subr.mxu0 0.0
    %1372 = vmatpush1.msra.mxu0 0.0
    %1373 = vmatprep.subr.mxu0 0.0
    %1374 = vmatpush1.msra.mxu0 0.0
    %1375 = vmatprep.subr.mxu0 0.0
    %1376 = vmatpush1.msra.mxu0 0.0
    %1377 = vmatprep.subr.mxu0 0.0
    %1378 = vmatpush1.msra.mxu0 0.0
    %1379 = vmatprep.subr.mxu0 0.0
    %1380 = vmatpush1.msra.mxu0 0.0
    %1381 = vmatprep.subr.mxu0 0.0
    %1382 = vmatpush1.msra.mxu0 0.0
    %1383 = vmatprep.subr.mxu0 0.0
    %1384 = vmatpush1.msra.mxu0 0.0
    %1385 = vmatprep.subr.mxu0 0.0
    %1386 = vmatpush1.msra.mxu0 0.0
    %1387 = vmatprep.subr.mxu0 0.0
    %1388 = vmatpush1.msra.mxu0 0.0
    %1389 = vmatprep.subr.mxu0 0.0
    %1390 = vmatpush1.msra.mxu0 0.0
    %1391 = vmatprep.subr.mxu0 0.0
    %1392 = vmatpush1.msra.mxu0 0.0
    %1393 = vmatprep.subr.mxu0 0.0
    %1394 = vmatpush1.msra.mxu0 0.0
    %1395 = vmatprep.subr.mxu0 0.0
    %1396 = vmatpush1.msra.mxu0 0.0
    %1397 = vmatprep.subr.mxu0 0.0
    %1398 = vmatpush1.msra.mxu0 0.0
    %1399 = vmatprep.subr.mxu0 0.0
    %1400 = vmatpush1.msra.mxu0 0.0
    %1401 = vmatprep.subr.mxu0 0.0
    %1402 = vmatpush1.msra.mxu0 0.0
    %1403 = vmatprep.subr.mxu0 0.0
    %1404 = vmatpush1.msra.mxu0 0.0
    %1405 = vmatprep.subr.mxu0 0.0
    %1406 = vmatpush1.msra.mxu0 0.0
    %1407 = vmatprep.mubr.f32.mxu0 0.0
    %1408 = vmatmul.mubr.f32.gmra.mrb[0].mxu0 %v1341
    %v1409 = vpop.f32.mrb[0].mxu0
    %v1410 = vadd.f32 0.0, %v1409
    %v1411 = vpop.f32.mrb[0].mxu0
    %1412 = vdwg.mxu0
    %v1413 = vld [vmem:[#allocation13] sm:$0x3]
    %v1415 = vsel %vm171, %v1413, 0
    %1417 = vmatprep.subr.mxu0 0.0
    %1418 = vmatpush1.msra.mxu0 %v1335
    %1419 = vmatprep.subr.mxu0 0.0
    %1420 = vmatpush1.msra.mxu0 %v1337
    %1421 = vmatprep.subr.mxu0 0.0
    %1422 = vmatpush1.msra.mxu0 0.0
    %1423 = vmatprep.subr.mxu0 0.0
    %1424 = vmatpush1.msra.mxu0 0.0
    %1425 = vmatprep.subr.mxu0 0.0
    %1426 = vmatpush1.msra.mxu0 0.0
    %1427 = vmatprep.subr.mxu0 0.0
    %1428 = vmatpush1.msra.mxu0 0.0
    %1429 = vmatprep.subr.mxu0 0.0
    %1430 = vmatpush1.msra.mxu0 0.0
    %1431 = vmatprep.subr.mxu0 0.0
    %1432 = vmatpush1.msra.mxu0 0.0
    %1433 = vmatprep.subr.mxu0 0.0
    %1434 = vmatpush1.msra.mxu0 0.0
    %1435 = vmatprep.subr.mxu0 0.0
    %1436 = vmatpush1.msra.mxu0 0.0
    %1437 = vmatprep.subr.mxu0 0.0
    %1438 = vmatpush1.msra.mxu0 0.0
    %1439 = vmatprep.subr.mxu0 0.0
    %1440 = vmatpush1.msra.mxu0 0.0
    %1441 = vmatprep.subr.mxu0 0.0
    %1442 = vmatpush1.msra.mxu0 0.0
    %1443 = vmatprep.subr.mxu0 0.0
    %1444 = vmatpush1.msra.mxu0 0.0
    %1445 = vmatprep.subr.mxu0 0.0
    %1446 = vmatpush1.msra.mxu0 0.0
    %1447 = vmatprep.subr.mxu0 0.0
    %1448 = vmatpush1.msra.mxu0 0.0
    %1449 = vmatprep.subr.mxu0 0.0
    %1450 = vmatpush1.msra.mxu0 0.0
    %1451 = vmatprep.subr.mxu0 0.0
    %1452 = vmatpush1.msra.mxu0 0.0
    %1453 = vmatprep.subr.mxu0 0.0
    %1454 = vmatpush1.msra.mxu0 0.0
    %1455 = vmatprep.subr.mxu0 0.0
    %1456 = vmatpush1.msra.mxu0 0.0
    %1457 = vmatprep.subr.mxu0 0.0
    %1458 = vmatpush1.msra.mxu0 0.0
    %1459 = vmatprep.subr.mxu0 0.0
    %1460 = vmatpush1.msra.mxu0 0.0
    %1461 = vmatprep.subr.mxu0 0.0
    %1462 = vmatpush1.msra.mxu0 0.0
    %1463 = vmatprep.subr.mxu0 0.0
    %1464 = vmatpush1.msra.mxu0 0.0
    %1465 = vmatprep.subr.mxu0 0.0
    %1466 = vmatpush1.msra.mxu0 0.0
    %1467 = vmatprep.subr.mxu0 0.0
    %1468 = vmatpush1.msra.mxu0 0.0
    %1469 = vmatprep.subr.mxu0 0.0
    %1470 = vmatpush1.msra.mxu0 0.0
    %1471 = vmatprep.subr.mxu0 0.0
    %1472 = vmatpush1.msra.mxu0 0.0
    %1473 = vmatprep.subr.mxu0 0.0
    %1474 = vmatpush1.msra.mxu0 0.0
    %1475 = vmatprep.subr.mxu0 0.0
    %1476 = vmatpush1.msra.mxu0 0.0
    %1477 = vmatprep.subr.mxu0 0.0
    %1478 = vmatpush1.msra.mxu0 0.0
    %1479 = vmatprep.subr.mxu0 0.0
    %1480 = vmatpush1.msra.mxu0 0.0
    %1481 = vmatprep.mubr.f32.mxu0 0.0
    %1482 = vmatmul.mubr.f32.gmra.mrb[0].mxu0 %v1415
    %v1483 = vpop.f32.mrb[0].mxu0
    %v1484 = vadd.f32 0.0, %v1483
    %v1485 = vpop.f32.mrb[0].mxu0
    %1486 = vdwg.mxu0
    %v1487 = vld [vmem:[%s14] sm:$0xff]
    %v1488 = vld [vmem:[%s14 + $0x8] sm:$0xff]
    %v1489 = vld [vmem:[%s14 + $0x10] sm:$0xff]
    %v1490 = vld [vmem:[%s14 + $0x18] sm:$0xff]
    %v1491 = vld [vmem:[%s15] sm:$0xff]
    %v1492 = vld [vmem:[%s15 + $0x8] sm:$0xff]
    %v1493 = vld [vmem:[%s15 + $0x10] sm:$0xff]
    %v1494 = vld [vmem:[%s15 + $0x18] sm:$0xff]
    %v1496 = vsel %vm277, %v1484, 0
    %1498 = vmatprep.subr.mxu0 0.0
    %1499 = vmatpush1.msra.mxu0 %v1491
    %1500 = vmatprep.subr.mxu0 0.0
    %1501 = vmatpush1.msra.mxu0 %v1492
    %1502 = vmatprep.subr.mxu0 0.0
    %1503 = vmatpush1.msra.mxu0 %v1493
    %1504 = vmatprep.subr.mxu0 0.0
    %1505 = vmatpush1.msra.mxu0 %v1494
    %1506 = vmatprep.subr.mxu0 0.0
    %1507 = vmatpush1.msra.mxu0 0.0
    %1508 = vmatprep.subr.mxu0 0.0
    %1509 = vmatpush1.msra.mxu0 0.0
    %1510 = vmatprep.subr.mxu0 0.0
    %1511 = vmatpush1.msra.mxu0 0.0
    %1512 = vmatprep.subr.mxu0 0.0
    %1513 = vmatpush1.msra.mxu0 0.0
    %1514 = vmatprep.subr.mxu0 0.0
    %1515 = vmatpush1.msra.mxu0 0.0
    %1516 = vmatprep.subr.mxu0 0.0
    %1517 = vmatpush1.msra.mxu0 0.0
    %1518 = vmatprep.subr.mxu0 0.0
    %1519 = vmatpush1.msra.mxu0 0.0
    %1520 = vmatprep.subr.mxu0 0.0
    %1521 = vmatpush1.msra.mxu0 0.0
    %1522 = vmatprep.subr.mxu0 0.0
    %1523 = vmatpush1.msra.mxu0 0.0
    %1524 = vmatprep.subr.mxu0 0.0
    %1525 = vmatpush1.msra.mxu0 0.0
    %1526 = vmatprep.subr.mxu0 0.0
    %1527 = vmatpush1.msra.mxu0 0.0
    %1528 = vmatprep.subr.mxu0 0.0
    %1529 = vmatpush1.msra.mxu0 0.0
    %1530 = vmatprep.subr.mxu0 0.0
    %1531 = vmatpush1.msra.mxu0 0.0
    %1532 = vmatprep.subr.mxu0 0.0
    %1533 = vmatpush1.msra.mxu0 0.0
    %1534 = vmatprep.subr.mxu0 0.0
    %1535 = vmatpush1.msra.mxu0 0.0
    %1536 = vmatprep.subr.mxu0 0.0
    %1537 = vmatpush1.msra.mxu0 0.0
    %1538 = vmatprep.subr.mxu0 0.0
    %1539 = vmatpush1.msra.mxu0 0.0
    %1540 = vmatprep.subr.mxu0 0.0
    %1541 = vmatpush1.msra.mxu0 0.0
    %1542 = vmatprep.subr.mxu0 0.0
    %1543 = vmatpush1.msra.mxu0 0.0
    %1544 = vmatprep.subr.mxu0 0.0
    %1545 = vmatpush1.msra.mxu0 0.0
    %1546 = vmatprep.subr.mxu0 0.0
    %1547 = vmatpush1.msra.mxu0 0.0
    %1548 = vmatprep.subr.mxu0 0.0
    %1549 = vmatpush1.msra.mxu0 0.0
    %1550 = vmatprep.subr.mxu0 0.0
    %1551 = vmatpush1.msra.mxu0 0.0
    %1552 = vmatprep.subr.mxu0 0.0
    %1553 = vmatpush1.msra.mxu0 0.0
    %1554 = vmatprep.subr.mxu0 0.0
    %1555 = vmatpush1.msra.mxu0 0.0
    %1556 = vmatprep.subr.mxu0 0.0
    %1557 = vmatpush1.msra.mxu0 0.0
    %1558 = vmatprep.subr.mxu0 0.0
    %1559 = vmatpush1.msra.mxu0 0.0
    %1560 = vmatprep.subr.mxu0 0.0
    %1561 = vmatpush1.msra.mxu0 0.0
    %1562 = vmatprep.mubr.f32.mxu0 0.0
    %1563 = vmatmul.mubr.f32.gmra.mrb[0].mxu0 %v1496
    %v1564 = vpop.f32.mrb[0].mxu0
    %v1565 = vadd.f32 0.0, %v1564
    %v1566 = vpop.f32.mrb[0].mxu0
    %1567 = vdwg.mxu0
    %v1569 = vsel %vm277, %v1410, 0
    %1571 = vmatprep.subr.mxu0 0.0
    %1572 = vmatpush1.msra.mxu0 %v1487
    %1573 = vmatprep.subr.mxu0 0.0
    %1574 = vmatpush1.msra.mxu0 %v1488
    %1575 = vmatprep.subr.mxu0 0.0
    %1576 = vmatpush1.msra.mxu0 %v1489
    %1577 = vmatprep.subr.mxu0 0.0
    %1578 = vmatpush1.msra.mxu0 %v1490
    %1579 = vmatprep.subr.mxu0 0.0
    %1580 = vmatpush1.msra.mxu0 0.0
    %1581 = vmatprep.subr.mxu0 0.0
    %1582 = vmatpush1.msra.mxu0 0.0
    %1583 = vmatprep.subr.mxu0 0.0
    %1584 = vmatpush1.msra.mxu0 0.0
    %1585 = vmatprep.subr.mxu0 0.0
    %1586 = vmatpush1.msra.mxu0 0.0
    %1587 = vmatprep.subr.mxu0 0.0
    %1588 = vmatpush1.msra.mxu0 0.0
    %1589 = vmatprep.subr.mxu0 0.0
    %1590 = vmatpush1.msra.mxu0 0.0
    %1591 = vmatprep.subr.mxu0 0.0
    %1592 = vmatpush1.msra.mxu0 0.0
    %1593 = vmatprep.subr.mxu0 0.0
    %1594 = vmatpush1.msra.mxu0 0.0
    %1595 = vmatprep.subr.mxu0 0.0
    %1596 = vmatpush1.msra.mxu0 0.0
    %1597 = vmatprep.subr.mxu0 0.0
    %1598 = vmatpush1.msra.mxu0 0.0
    %1599 = vmatprep.subr.mxu0 0.0
    %1600 = vmatpush1.msra.mxu0 0.0
    %1601 = vmatprep.subr.mxu0 0.0
    %1602 = vmatpush1.msra.mxu0 0.0
    %1603 = vmatprep.subr.mxu0 0.0
    %1604 = vmatpush1.msra.mxu0 0.0
    %1605 = vmatprep.subr.mxu0 0.0
    %1606 = vmatpush1.msra.mxu0 0.0
    %1607 = vmatprep.subr.mxu0 0.0
    %1608 = vmatpush1.msra.mxu0 0.0
    %1609 = vmatprep.subr.mxu0 0.0
    %1610 = vmatpush1.msra.mxu0 0.0
    %1611 = vmatprep.subr.mxu0 0.0
    %1612 = vmatpush1.msra.mxu0 0.0
    %1613 = vmatprep.subr.mxu0 0.0
    %1614 = vmatpush1.msra.mxu0 0.0
    %1615 = vmatprep.subr.mxu0 0.0
    %1616 = vmatpush1.msra.mxu0 0.0
    %1617 = vmatprep.subr.mxu0 0.0
    %1618 = vmatpush1.msra.mxu0 0.0
    %1619 = vmatprep.subr.mxu0 0.0
    %1620 = vmatpush1.msra.mxu0 0.0
    %1621 = vmatprep.subr.mxu0 0.0
    %1622 = vmatpush1.msra.mxu0 0.0
    %1623 = vmatprep.subr.mxu0 0.0
    %1624 = vmatpush1.msra.mxu0 0.0
    %1625 = vmatprep.subr.mxu0 0.0
    %1626 = vmatpush1.msra.mxu0 0.0
    %1627 = vmatprep.subr.mxu0 0.0
    %1628 = vmatpush1.msra.mxu0 0.0
    %1629 = vmatprep.subr.mxu0 0.0
    %1630 = vmatpush1.msra.mxu0 0.0
    %1631 = vmatprep.subr.mxu0 0.0
    %1632 = vmatpush1.msra.mxu0 0.0
    %1633 = vmatprep.subr.mxu0 0.0
    %1634 = vmatpush1.msra.mxu0 0.0
    %1635 = vmatprep.mubr.f32.mxu0 0.0
    %1636 = vmatmul.mubr.f32.gmra.mrb[0].mxu0 %v1569
    %v1637 = vpop.f32.mrb[0].mxu0
    %v1638 = vadd.f32 %v1565, %v1637
    %v1639 = vpop.f32.mrb[0].mxu0
    %1640 = vdwg.mxu0
    %v1641 = vld [vmem:[#allocation5] sm:$0x3]
    %v1642 = vld [vmem:[%s16] sm:$0xff]
    %vm1643 = vcmask 64512
    %v1645 = vsel %vm1643, %v1641, 0
    %1647 = vmatprep.subr.mxu0 0.0
    %1648 = vmatpush1.msra.mxu0 %v1642
    %1649 = vmatprep.subr.mxu0 0.0
    %1650 = vmatpush1.msra.mxu0 0.0
    %1651 = vmatprep.subr.mxu0 0.0
    %1652 = vmatpush1.msra.mxu0 0.0
    %1653 = vmatprep.subr.mxu0 0.0
    %1654 = vmatpush1.msra.mxu0 0.0
    %1655 = vmatprep.subr.mxu0 0.0
    %1656 = vmatpush1.msra.mxu0 0.0
    %1657 = vmatprep.subr.mxu0 0.0
    %1658 = vmatpush1.msra.mxu0 0.0
    %1659 = vmatprep.subr.mxu0 0.0
    %1660 = vmatpush1.msra.mxu0 0.0
    %1661 = vmatprep.subr.mxu0 0.0
    %1662 = vmatpush1.msra.mxu0 0.0
    %1663 = vmatprep.subr.mxu0 0.0
    %1664 = vmatpush1.msra.mxu0 0.0
    %1665 = vmatprep.subr.mxu0 0.0
    %1666 = vmatpush1.msra.mxu0 0.0
    %1667 = vmatprep.subr.mxu0 0.0
    %1668 = vmatpush1.msra.mxu0 0.0
    %1669 = vmatprep.subr.mxu0 0.0
    %1670 = vmatpush1.msra.mxu0 0.0
    %1671 = vmatprep.subr.mxu0 0.0
    %1672 = vmatpush1.msra.mxu0 0.0
    %1673 = vmatprep.subr.mxu0 0.0
    %1674 = vmatpush1.msra.mxu0 0.0
    %1675 = vmatprep.subr.mxu0 0.0
    %1676 = vmatpush1.msra.mxu0 0.0
    %1677 = vmatprep.subr.mxu0 0.0
    %1678 = vmatpush1.msra.mxu0 0.0
    %1679 = vmatprep.subr.mxu0 0.0
    %1680 = vmatpush1.msra.mxu0 0.0
    %1681 = vmatprep.subr.mxu0 0.0
    %1682 = vmatpush1.msra.mxu0 0.0
    %1683 = vmatprep.subr.mxu0 0.0
    %1684 = vmatpush1.msra.mxu0 0.0
    %1685 = vmatprep.subr.mxu0 0.0
    %1686 = vmatpush1.msra.mxu0 0.0
    %1687 = vmatprep.subr.mxu0 0.0
    %1688 = vmatpush1.msra.mxu0 0.0
    %1689 = vmatprep.subr.mxu0 0.0
    %1690 = vmatpush1.msra.mxu0 0.0
    %1691 = vmatprep.subr.mxu0 0.0
    %1692 = vmatpush1.msra.mxu0 0.0
    %1693 = vmatprep.subr.mxu0 0.0
    %1694 = vmatpush1.msra.mxu0 0.0
    %1695 = vmatprep.subr.mxu0 0.0
    %1696 = vmatpush1.msra.mxu0 0.0
    %1697 = vmatprep.subr.mxu0 0.0
    %1698 = vmatpush1.msra.mxu0 0.0
    %1699 = vmatprep.subr.mxu0 0.0
    %1700 = vmatpush1.msra.mxu0 0.0
    %1701 = vmatprep.subr.mxu0 0.0
    %1702 = vmatpush1.msra.mxu0 0.0
    %1703 = vmatprep.subr.mxu0 0.0
    %1704 = vmatpush1.msra.mxu0 0.0
    %1705 = vmatprep.subr.mxu0 0.0
    %1706 = vmatpush1.msra.mxu0 0.0
    %1707 = vmatprep.subr.mxu0 0.0
    %1708 = vmatpush1.msra.mxu0 0.0
    %1709 = vmatprep.subr.mxu0 0.0
    %1710 = vmatpush1.msra.mxu0 0.0
    %1711 = vmatprep.mubr.f32.mxu0 0.0
    %1712 = vmatmul.mubr.f32.gmra.mrb[0].mxu0 %v1645
    %v1713 = vpop.f32.mrb[0].mxu0
    %v1714 = vadd.f32 0.0, %v1713
    %v1715 = vpop.f32.mrb[0].mxu0
    %1716 = vdwg.mxu0
    %v1717 = vadd.f32 %v1638, %v1714
    %v1718 = vld [vmem:[%s17] sm:$0x1]
    %v1720 = vlaneseq
    %v1721 = vshrl.u32 %v1720, 7
    %v1722 = vsub.s32 0, %v1721
    %v1723 = vrot.slane %v1718, %v1722
    %v1725 = vadd.f32 %v1717, %v1723
    %v1726 = vmax.f32 %v1725, 0.0
    %v1727 = vld [vmem:[%s18] sm:$0xff]
    %v1728 = vld [vmem:[%s18 + $0x8] sm:$0xff]
    %v1729 = vld [vmem:[%s18 + $0x10] sm:$0xff]
    %v1730 = vld [vmem:[%s18 + $0x18] sm:$0xff]
    %v1731 = vld [vmem:[%s19] sm:$0x1]
    %v1733 = vlaneseq
    %v1734 = vshrl.u32 %v1733, 7
    %v1735 = vsub.s32 0, %v1734
    %v1736 = vrot.slane %v1731, %v1735
    %v1739 = vsel %vm277, %v1726, 0
    %1741 = vmatprep.subr.mxu0 0.0
    %1742 = vmatpush1.msra.mxu0 %v1727
    %1743 = vmatprep.subr.mxu0 0.0
    %1744 = vmatpush1.msra.mxu0 %v1728
    %1745 = vmatprep.subr.mxu0 0.0
    %1746 = vmatpush1.msra.mxu0 %v1729
    %1747 = vmatprep.subr.mxu0 0.0
    %1748 = vmatpush1.msra.mxu0 %v1730
    %1749 = vmatprep.subr.mxu0 0.0
    %1750 = vmatpush1.msra.mxu0 0.0
    %1751 = vmatprep.subr.mxu0 0.0
    %1752 = vmatpush1.msra.mxu0 0.0
    %1753 = vmatprep.subr.mxu0 0.0
    %1754 = vmatpush1.msra.mxu0 0.0
    %1755 = vmatprep.subr.mxu0 0.0
    %1756 = vmatpush1.msra.mxu0 0.0
    %1757 = vmatprep.subr.mxu0 0.0
    %1758 = vmatpush1.msra.mxu0 0.0
    %1759 = vmatprep.subr.mxu0 0.0
    %1760 = vmatpush1.msra.mxu0 0.0
    %1761 = vmatprep.subr.mxu0 0.0
    %1762 = vmatpush1.msra.mxu0 0.0
    %1763 = vmatprep.subr.mxu0 0.0
    %1764 = vmatpush1.msra.mxu0 0.0
    %1765 = vmatprep.subr.mxu0 0.0
    %1766 = vmatpush1.msra.mxu0 0.0
    %1767 = vmatprep.subr.mxu0 0.0
    %1768 = vmatpush1.msra.mxu0 0.0
    %1769 = vmatprep.subr.mxu0 0.0
    %1770 = vmatpush1.msra.mxu0 0.0
    %1771 = vmatprep.subr.mxu0 0.0
    %1772 = vmatpush1.msra.mxu0 0.0
    %1773 = vmatprep.subr.mxu0 0.0
    %1774 = vmatpush1.msra.mxu0 0.0
    %1775 = vmatprep.subr.mxu0 0.0
    %1776 = vmatpush1.msra.mxu0 0.0
    %1777 = vmatprep.subr.mxu0 0.0
    %1778 = vmatpush1.msra.mxu0 0.0
    %1779 = vmatprep.subr.mxu0 0.0
    %1780 = vmatpush1.msra.mxu0 0.0
    %1781 = vmatprep.subr.mxu0 0.0
    %1782 = vmatpush1.msra.mxu0 0.0
    %1783 = vmatprep.subr.mxu0 0.0
    %1784 = vmatpush1.msra.mxu0 0.0
    %1785 = vmatprep.subr.mxu0 0.0
    %1786 = vmatpush1.msra.mxu0 0.0
    %1787 = vmatprep.subr.mxu0 0.0
    %1788 = vmatpush1.msra.mxu0 0.0
    %1789 = vmatprep.subr.mxu0 0.0
    %1790 = vmatpush1.msra.mxu0 0.0
    %1791 = vmatprep.subr.mxu0 0.0
    %1792 = vmatpush1.msra.mxu0 0.0
    %1793 = vmatprep.subr.mxu0 0.0
    %1794 = vmatpush1.msra.mxu0 0.0
    %1795 = vmatprep.subr.mxu0 0.0
    %1796 = vmatpush1.msra.mxu0 0.0
    %1797 = vmatprep.subr.mxu0 0.0
    %1798 = vmatpush1.msra.mxu0 0.0
    %1799 = vmatprep.subr.mxu0 0.0
    %1800 = vmatpush1.msra.mxu0 0.0
    %1801 = vmatprep.subr.mxu0 0.0
    %1802 = vmatpush1.msra.mxu0 0.0
    %1803 = vmatprep.subr.mxu0 0.0
    %1804 = vmatpush1.msra.mxu0 0.0
    %1805 = vmatprep.mubr.f32.mxu0 0.0
    %1806 = vmatmul.mubr.f32.gmra.mrb[0].mxu0 %v1739
    %v1807 = vpop.f32.mrb[0].mxu0
    %v1808 = vadd.f32 %v1736, %v1807
    %v1809 = vpop.f32.mrb[0].mxu0
    %1810 = vdwg.mxu0
    %v1811 = vmax.f32 %v1808, 0.0
    %v1812 = vld [vmem:[%s20] sm:$0xff]
    %v1813 = vld [vmem:[%s20 + $0x8] sm:$0xff]
    %v1814 = vld [vmem:[%s21] sm:$0x1]
    %v1816 = vlaneseq
    %v1817 = vshrl.u32 %v1816, 7
    %v1818 = vsub.s32 0, %v1817
    %v1819 = vrot.slane %v1814, %v1818
    %v1822 = vsel %vm171, %v1811, 0
    %1824 = vmatprep.subr.mxu0 0.0
    %1825 = vmatpush1.msra.mxu0 %v1812
    %1826 = vmatprep.subr.mxu0 0.0
    %1827 = vmatpush1.msra.mxu0 %v1813
    %1828 = vmatprep.subr.mxu0 0.0
    %1829 = vmatpush1.msra.mxu0 0.0
    %1830 = vmatprep.subr.mxu0 0.0
    %1831 = vmatpush1.msra.mxu0 0.0
    %1832 = vmatprep.subr.mxu0 0.0
    %1833 = vmatpush1.msra.mxu0 0.0
    %1834 = vmatprep.subr.mxu0 0.0
    %1835 = vmatpush1.msra.mxu0 0.0
    %1836 = vmatprep.subr.mxu0 0.0
    %1837 = vmatpush1.msra.mxu0 0.0
    %1838 = vmatprep.subr.mxu0 0.0
    %1839 = vmatpush1.msra.mxu0 0.0
    %1840 = vmatprep.subr.mxu0 0.0
    %1841 = vmatpush1.msra.mxu0 0.0
    %1842 = vmatprep.subr.mxu0 0.0
    %1843 = vmatpush1.msra.mxu0 0.0
    %1844 = vmatprep.subr.mxu0 0.0
    %1845 = vmatpush1.msra.mxu0 0.0
    %1846 = vmatprep.subr.mxu0 0.0
    %1847 = vmatpush1.msra.mxu0 0.0
    %1848 = vmatprep.subr.mxu0 0.0
    %1849 = vmatpush1.msra.mxu0 0.0
    %1850 = vmatprep.subr.mxu0 0.0
    %1851 = vmatpush1.msra.mxu0 0.0
    %1852 = vmatprep.subr.mxu0 0.0
    %1853 = vmatpush1.msra.mxu0 0.0
    %1854 = vmatprep.subr.mxu0 0.0
    %1855 = vmatpush1.msra.mxu0 0.0
    %1856 = vmatprep.subr.mxu0 0.0
    %1857 = vmatpush1.msra.mxu0 0.0
    %1858 = vmatprep.subr.mxu0 0.0
    %1859 = vmatpush1.msra.mxu0 0.0
    %1860 = vmatprep.subr.mxu0 0.0
    %1861 = vmatpush1.msra.mxu0 0.0
    %1862 = vmatprep.subr.mxu0 0.0
    %1863 = vmatpush1.msra.mxu0 0.0
    %1864 = vmatprep.subr.mxu0 0.0
    %1865 = vmatpush1.msra.mxu0 0.0
    %1866 = vmatprep.subr.mxu0 0.0
    %1867 = vmatpush1.msra.mxu0 0.0
    %1868 = vmatprep.subr.mxu0 0.0
    %1869 = vmatpush1.msra.mxu0 0.0
    %1870 = vmatprep.subr.mxu0 0.0
    %1871 = vmatpush1.msra.mxu0 0.0
    %1872 = vmatprep.subr.mxu0 0.0
    %1873 = vmatpush1.msra.mxu0 0.0
    %1874 = vmatprep.subr.mxu0 0.0
    %1875 = vmatpush1.msra.mxu0 0.0
    %1876 = vmatprep.subr.mxu0 0.0
    %1877 = vmatpush1.msra.mxu0 0.0
    %1878 = vmatprep.subr.mxu0 0.0
    %1879 = vmatpush1.msra.mxu0 0.0
    %1880 = vmatprep.subr.mxu0 0.0
    %1881 = vmatpush1.msra.mxu0 0.0
    %1882 = vmatprep.subr.mxu0 0.0
    %1883 = vmatpush1.msra.mxu0 0.0
    %1884 = vmatprep.subr.mxu0 0.0
    %1885 = vmatpush1.msra.mxu0 0.0
    %1886 = vmatprep.subr.mxu0 0.0
    %1887 = vmatpush1.msra.mxu0 0.0
    %1888 = vmatprep.mubr.f32.mxu0 0.0
    %1889 = vmatmul.mubr.f32.gmra.mrb[0].mxu0 %v1822
    %v1890 = vpop.f32.mrb[0].mxu0
    %v1891 = vadd.f32 %v1819, %v1890
    %v1892 = vpop.f32.mrb[0].mxu0
    %1893 = vdwg.mxu0
    %v1894 = vxor.u32 %v1891, 2147483648
    %v1895 = vmul.f32 %v1894, 1.442695
    %v1896 = vpow.pop %v1895
    %v1897 = vadd.f32 %v1896, 1.0
    %v1898 = vrcp.pop %v1897
    %v1899 = vmul.f32 1.0, %v1898
    %vm1900 = vcmask 25600
    %1901 = vst.msk [vmem:[#allocation14] sm:$0x3] %vm1900, %v1899
    // Predicated region
    $region118: #{tpu_custom_call.1} parent=1 // pred_check
      _
    $region119: #{tpu_custom_call.1} parent=1 // pred_check_branch
      %1903 = sbr.rel (0) target = $region121
    $region120: #{tpu_custom_call.1} parent=1 // pred_region
      %s1905 = ssub.s32 32, 32
      %1906 = vsyncadd [#allocation4], %s1905
      %s1908 = sshll.u32 [#allocation14], 4
      %s1909 = int_to_ptr.vmem [resolvable:$true] %s1908
      %1911 = dma.vmem_to_hbm [thread:$0]  %s1909, 32, %s22, [#allocation4]
    $region121: #{tpu_custom_call.1} parent=1 // pred_fallthru
      _
    // Predicated region
    $region122: #{tpu_custom_call.1} parent=1 // pred_check
      _
    $region123: #{tpu_custom_call.1} parent=1 // pred_check_branch
      %1913 = sbr.rel (0) target = $region125
    $region124: #{tpu_custom_call.1} parent=1 // pred_region
      %1914 = dma.done [#allocation4], 32
    $region125: #{tpu_custom_call.1} parent=1 // pred_fallthru
      _
    %1915 = vsyncpa [#allocation3], 1
    %1916 = vsyncpa [#allocation6], 1
    %1917 = vsyncpa [#allocation9], 1
    %1918 = vsyncpa [#allocation12], 1
    %1919 = vsyncpa [#allocation4], 1

</llo_original>
